<compile_context>
chip_gen: v7x
topology: tpu7x:2x2x1
jax: 0.10.0
libtpu: 0.0.40
codegen_flags: <defaults>
</compile_context>

<pallas_src>
import numpy as np
import jax
import jax.numpy as jnp
from jax.experimental import pallas as pl
from jax.experimental.pallas import tpu as pltpu

# ----------------------- small config consistent with the module -----------------------
BATCH = 2
NOISE_DIM = 32          # noise_latent_dim
DATA_CHANNELS = 16      # module arg; doubled internally because gating=False
K_EIGVAL = 8            # <= 32 -> 4 deconv layers, last one has 1 output channel
N_MAX = 36
IN_SIZE = 2
ALPHA = 0.2             # LeakyReLU slope for fc1
EPS = 1e-5              # InstanceNorm1d eps (biased variance, per (b, c) over length)

C = DATA_CHANNELS * 2   # internal channel count (gating=False and k_eigval<=32)
DIM = 2 * C             # real flattened width C_in*L_in == C_out*L_out == 64
DIM_PAD = 128           # lane-padded width: full vreg lane dim -> unmasked, aligned tiles
MATMUL_DTYPE = jnp.bfloat16   # MXU operand dtype (f32 accumulation)

# (out_channels, kernel, stride, padding, output_padding) per Transpose1dLayer
LAYER_CFGS = [
    (C // 2, 5, 2, 2, 1),    # L: 2  -> 4
    (C // 4, 9, 2, 4, 1),    # L: 4  -> 8
    (C // 8, 17, 2, 8, 1),   # L: 8  -> 16
    (1, 25, 2, 12, 1),       # L: 16 -> 32, activation 'tanh_last'
]
N_LAYERS = len(LAYER_CFGS)


# ----------------------------------- Pallas kernel --------------------------------------
def _erf(x):
    # Abramowitz & Stegun 7.1.26 rational approximation (|err| < 1.5e-7): uses only ops
    # that lower cleanly on TPU (exp / mul / add / div / select).
    a1, a2, a3, a4, a5 = 0.254829592, -0.284496736, 1.421413741, -1.453152027, 1.061405429
    p = 0.3275911
    sign = jnp.where(x >= 0.0, 1.0, -1.0)
    ax = jnp.abs(x)
    t = 1.0 / (1.0 + p * ax)
    poly = ((((a5 * t + a4) * t + a3) * t + a2) * t + a1) * t
    y = 1.0 - poly * jnp.exp(-ax * ax)
    return sign * y


def _gelu_exact(x):
    # F.gelu default (erf-based, not tanh approximation)
    return x * 0.5 * (1.0 + _erf(x * np.float32(1.0 / np.sqrt(2.0))))


def _generator_kernel(noise_ref, mask_ref, mat_ref, a_ref, bias_ref, out_ref):
    """Fused LambdaGenerator forward for one batch tile.

    noise_ref : (B, DIM_PAD) f32   noise lane-padded past NOISE_DIM with zeros
    mask_ref  : (B, DIM_PAD) f32   eigval mask, zero-padded past K_EIGVAL
    mat_ref   : (1+N_LAYERS, DIM_PAD, DIM_PAD) bf16  [fc1 weight ; dense convT matrices]
    a_ref     : (N_LAYERS, DIM_PAD, DIM_PAD) f32     block-diag averaging matrices (inst. norm)
    bias_ref  : (1+N_LAYERS, 1, DIM_PAD) f32         [fc1 bias ; pre-broadcast convT biases]
    out_ref   : (B, DIM_PAD) f32
    """
    bsz = noise_ref.shape[0]

    # fc1: Linear + LeakyReLU(alpha); bf16 operands, f32 accumulation.
    x = jnp.dot(noise_ref[...].astype(MATMUL_DTYPE), mat_ref[0],
                preferred_element_type=jnp.float32) + bias_ref[0]
    x = jnp.maximum(x, ALPHA * x)   # LeakyReLU(0.2) as a single VPU max
    # x is the flattened (B, C, in_size) tensor (lane-padded); dropout p=0.0 -> identity.

    for li in range(N_LAYERS):
        # InstanceNorm1d: per-(b, c) mean/var over length, realized as ONE matmul with a
        # block-diagonal averaging matrix by stacking [x ; x*x] along the sublane axis.
        xx = jnp.concatenate([x, x * x], axis=0)                      # (2B, DIM_PAD)
        mm = jnp.dot(xx, a_ref[li], preferred_element_type=jnp.float32)
        mean, mean_sq = mm[:bsz], mm[bsz:]
        var = mean_sq - mean * mean
        xn = (x - mean) * jax.lax.rsqrt(var + EPS)

        # ConvTranspose1d as dense matmul (bf16 operands, f32 acc) + per-channel bias.
        y = jnp.dot(xn.astype(MATMUL_DTYPE), mat_ref[li + 1],
                    preferred_element_type=jnp.float32) + bias_ref[li + 1]

        if li < N_LAYERS - 1:
            x = _gelu_exact(y)        # 'LeakyReLU' string falls through to F.gelu
        else:
            x = 2.0 * jnp.tanh(y)     # 'tanh_last'

    # Single unconditional lane-dense full-tile store; mask is zero-padded past K_EIGVAL.
    out_ref[...] = x * mask_ref[...]


# ------------------------------------ glue / wrapper -------------------------------------
def _build_dense_convT(w, l_in, stride, padding, output_padding):
    """Dense D s.t. convT(x)[b, oc, t] = sum_{ic,i} x[b,ic,i] * D[ic*Lin+i, oc*Lout+t]."""
    c_in, c_out, ksize = w.shape
    l_out = (l_in - 1) * stride - 2 * padding + ksize + output_padding
    i_idx = jnp.arange(l_in)[:, None]
    t_idx = jnp.arange(l_out)[None, :]
    k = t_idx + padding - i_idx * stride                     # (Lin, Lout)
    valid = ((k >= 0) & (k < ksize)).astype(w.dtype)
    kc = jnp.clip(k, 0, ksize - 1)
    wg = w[:, :, kc] * valid[None, None, :, :]               # (Cin, Cout, Lin, Lout)
    dense = jnp.transpose(wg, (0, 2, 1, 3)).reshape(c_in * l_in, c_out * l_out)
    return dense, l_out


def _pad2d(x, rows, cols):
    return jnp.pad(x, ((0, rows - x.shape[0]), (0, cols - x.shape[1])))


def init_params(key):
    keys = jax.random.split(key, 1 + N_LAYERS)
    w1 = (jax.random.normal(keys[0], (NOISE_DIM, DIM)) * 0.1).astype(jnp.float32)
    b1 = jnp.zeros((1, DIM), jnp.float32)                    # biases initialized to zero

    conv_w, conv_b = [], []
    mat_list = [_pad2d(w1, DIM_PAD, DIM_PAD)]                # fc1 weight (zero-padded rows/cols)
    bias_list = [_pad2d(b1, 1, DIM_PAD)]
    a_list = []
    c_in, l_in = C, IN_SIZE
    for li, (c_out, ksize, stride, pad, outpad) in enumerate(LAYER_CFGS):
        w = (jax.random.normal(keys[1 + li], (c_in, c_out, ksize)) * 0.1).astype(jnp.float32)
        b = jnp.zeros((c_out,), jnp.float32)
        assert c_in * l_in == DIM
        dense, l_out = _build_dense_convT(w, l_in, stride, pad, outpad)
        bvec = jnp.repeat(b, l_out)[None, :]                  # (1, Cout*Lout)
        if li == N_LAYERS - 1:
            # Prune unused output columns: only the first K_EIGVAL survive the final slice.
            dense = dense[:, :K_EIGVAL]
            bvec = bvec[:, :K_EIGVAL]
        avg = jnp.kron(jnp.eye(c_in, dtype=jnp.float32),
                       jnp.ones((l_in, l_in), jnp.float32) / float(l_in))
        a_list.append(_pad2d(avg, DIM_PAD, DIM_PAD))
        mat_list.append(_pad2d(dense, DIM_PAD, DIM_PAD))
        bias_list.append(_pad2d(bvec, 1, DIM_PAD))
        conv_w.append(w)
        conv_b.append(b)
        c_in, l_in = c_out, l_out

    packed = {
        "mat_stack": jnp.stack(mat_list).astype(MATMUL_DTYPE),   # (5,128,128) bf16 MXU operands
        "a_stack": jnp.stack(a_list),                            # (4,128,128) f32 (norm precision)
        "bias_stack": jnp.stack(bias_list),                      # (5,1,128) f32
    }
    return {"w1": w1, "b1": b1, "conv_w": conv_w, "conv_b": conv_b, "packed": packed}


def lambda_generator_forward(noise, mask, params, b_tile=128):
    packed = params["packed"]
    B = noise.shape[0]
    noise = noise.astype(jnp.float32)
    noise_pad = jnp.zeros((B, DIM_PAD), jnp.float32).at[:, :NOISE_DIM].set(noise)
    mask_eig = mask[:, 0, :K_EIGVAL].astype(jnp.float32)
    mask_pad = jnp.zeros((B, DIM_PAD), jnp.float32).at[:, :K_EIGVAL].set(mask_eig)

    weight_ins = (packed["mat_stack"], packed["a_stack"], packed["bias_stack"])

    if B <= b_tile:
        # Single ungridded invocation: no pipeline scaffolding, no double buffers.
        out = pl.pallas_call(
            _generator_kernel,
            out_shape=jax.ShapeDtypeStruct((B, DIM_PAD), jnp.float32),
        )(noise_pad, mask_pad, *weight_ins)
    else:
        # Batched path: tile the batch over a "parallel" grid (v7x: both TensorCores).
        assert b_tile % 8 == 0, "batch tile must be a multiple of 8 sublanes"
        nb = pl.cdiv(B, b_tile)
        b_pad = nb * b_tile
        if b_pad != B:
            noise_pad = jnp.zeros((b_pad, DIM_PAD), jnp.float32).at[:B].set(noise_pad)
            mask_pad = jnp.zeros((b_pad, DIM_PAD), jnp.float32).at[:B].set(mask_pad)

        def bcast(arr):
            nd = arr.ndim
            return pl.BlockSpec(arr.shape, lambda i, nd=nd: (0,) * nd)

        out = pl.pallas_call(
            _generator_kernel,
            grid=(nb,),
            in_specs=[
                pl.BlockSpec((b_tile, DIM_PAD), lambda i: (i, 0)),
                pl.BlockSpec((b_tile, DIM_PAD), lambda i: (i, 0)),
                bcast(packed["mat_stack"]),
                bcast(packed["a_stack"]),
                bcast(packed["bias_stack"]),
            ],
            out_specs=pl.BlockSpec((b_tile, DIM_PAD), lambda i: (i, 0)),
            out_shape=jax.ShapeDtypeStruct((b_pad, DIM_PAD), jnp.float32),
            compiler_params=pltpu.CompilerParams(dimension_semantics=("parallel",)),
        )(noise_pad, mask_pad, *weight_ins)
        out = out[:B]

    return out[:, :K_EIGVAL]


# ------------------------------- pure-JAX reference (check) ------------------------------
def _ref_convT1d(x, w, b, stride, padding, output_padding):
    bsz, c_in, l_in = x.shape
    _, c_out, ksize = w.shape
    l_out = (l_in - 1) * stride - 2 * padding + ksize + output_padding
    full = (l_in - 1) * stride + ksize
    y = jnp.zeros((bsz, c_out, full), jnp.float32)
    for i in range(l_in):
        y = y.at[:, :, i * stride:i * stride + ksize].add(
            jnp.einsum("bc,cok->bok", x[:, :, i], w,
                       preferred_element_type=jnp.float32))
    y = y[:, :, padding:padding + l_out]
    return y + b[None, :, None].astype(jnp.float32)


def reference_forward(noise, mask, params, matmul_dtype=jnp.float32):
    """Module semantics.  matmul_dtype=float32 -> exact module math;
    matmul_dtype=bfloat16 -> mirrors the kernel's bf16-operand / f32-accumulate matmuls."""
    mask_eig = mask[:, 0, :K_EIGVAL].astype(jnp.float32)
    x = jnp.dot(noise.astype(matmul_dtype), params["w1"].astype(matmul_dtype),
                preferred_element_type=jnp.float32)
    x = x + params["b1"][0]
    x = jnp.where(x >= 0.0, x, ALPHA * x)
    x = x.reshape(noise.shape[0], C, IN_SIZE)
    for li, (c_out, ksize, stride, pad, outpad) in enumerate(LAYER_CFGS):
        m = x.mean(axis=-1, keepdims=True)
        v = jnp.mean((x - m) ** 2, axis=-1, keepdims=True)
        x = (x - m) / jnp.sqrt(v + EPS)
        x = _ref_convT1d(x.astype(matmul_dtype),
                         params["conv_w"][li].astype(matmul_dtype),
                         params["conv_b"][li], stride, pad, outpad)
        if li < N_LAYERS - 1:
            x = jax.nn.gelu(x, approximate=False)
        else:
            x = 2.0 * jnp.tanh(x)
    x = x[:, 0, :K_EIGVAL]          # squeeze(1) (last layer has 1 channel) + eigval slice
    return x * mask_eig


# ----------------------------------------- main ------------------------------------------
if __name__ == "__main__":
    key = jax.random.PRNGKey(0)
    k_p, k_n, k_m, k_n2, k_m2 = jax.random.split(key, 5)

    params = init_params(k_p)

    # --- small config (batch=2): ungridded single-invocation path ---
    noise = jax.random.normal(k_n, (BATCH, NOISE_DIM), jnp.float32)
    mask = jax.random.bernoulli(k_m, 0.7, (BATCH, 1, N_MAX)).astype(jnp.float32)

    out = jax.block_until_ready(lambda_generator_forward(noise, mask, params))
    assert out.shape == (BATCH, K_EIGVAL) and out.dtype == jnp.float32

    # Structural check: against a reference using the same bf16-operand matmul numerics.
    ref_bf16 = jax.block_until_ready(
        reference_forward(noise, mask, params, matmul_dtype=MATMUL_DTYPE))
    np.testing.assert_allclose(np.asarray(out), np.asarray(ref_bf16), rtol=5e-3, atol=5e-4)

    # Semantics check: against the pure-f32 module math (tolerance covers bf16 operands).
    ref_f32 = jax.block_until_ready(reference_forward(noise, mask, params))
    np.testing.assert_allclose(np.asarray(out), np.asarray(ref_f32), rtol=5e-2, atol=2e-2)

    # --- batched path (B=16, tile=8): grid over batch, "parallel" semantics ---
    noise_b = jax.random.normal(k_n2, (16, NOISE_DIM), jnp.float32)
    mask_b = jax.random.bernoulli(k_m2, 0.7, (16, 1, N_MAX)).astype(jnp.float32)
    out_b = jax.block_until_ready(
        lambda_generator_forward(noise_b, mask_b, params, b_tile=8))
    ref_b = jax.block_until_ready(
        reference_forward(noise_b, mask_b, params, matmul_dtype=MATMUL_DTYPE))
    assert out_b.shape == (16, K_EIGVAL)
    np.testing.assert_allclose(np.asarray(out_b), np.asarray(ref_b), rtol=5e-3, atol=5e-4)

    print("KERNEL_OK")
</pallas_src>

<mosaic_0001>
module attributes {stable_mosaic.version = 11 : i64} {
  func.func @_generator_kernel(%arg0: memref<2x128xf32, #tpu.memory_space<vmem>>, %arg1: memref<2x128xf32, #tpu.memory_space<vmem>>, %arg2: memref<5x128x128xbf16, #tpu.memory_space<vmem>>, %arg3: memref<4x128x128xf32, #tpu.memory_space<vmem>>, %arg4: memref<5x1x128xf32, #tpu.memory_space<vmem>>, %arg5: memref<2x128xf32, #tpu.memory_space<vmem>>) attributes {dimension_semantics = [], scalar_prefetch = 0 : i64, scratch_operands = 0 : i64, tpu.core_type = #tpu.core_type<tc>} {
    %c0 = arith.constant 0 : index
    %c0_0 = arith.constant 0 : index
    %0 = vector.load %arg0[%c0, %c0_0] : memref<2x128xf32, #tpu.memory_space<vmem>>, vector<2x128xf32>
    %1 = arith.truncf %0 : vector<2x128xf32> to vector<2x128xbf16>
    %c0_1 = arith.constant 0 : index
    %c0_2 = arith.constant 0 : index
    %c0_3 = arith.constant 0 : index
    %2 = vector.load %arg2[%c0_1, %c0_2, %c0_3] : memref<5x128x128xbf16, #tpu.memory_space<vmem>>, vector<1x128x128xbf16>
    %3 = vector.shape_cast %2 : vector<1x128x128xbf16> to vector<128x128xbf16>
    %cst = arith.constant dense<0.000000e+00> : vector<2x128xf32>
    %4 = tpu.matmul %1, %3, %cst {dimension_numbers = #tpu.dot_dimension_numbers<[1], [0], [0], [1], [0, 0, 1, 1], [], []>} : vector<2x128xbf16>, vector<128x128xbf16>, vector<2x128xf32> -> vector<2x128xf32>
    %c0_4 = arith.constant 0 : index
    %c0_5 = arith.constant 0 : index
    %c0_6 = arith.constant 0 : index
    %5 = vector.load %arg4[%c0_4, %c0_5, %c0_6] : memref<5x1x128xf32, #tpu.memory_space<vmem>>, vector<1x1x128xf32>
    %6 = vector.shape_cast %5 : vector<1x1x128xf32> to vector<1x128xf32>
    %7 = vector.broadcast %6 : vector<1x128xf32> to vector<2x128xf32>
    %8 = arith.addf %4, %7 : vector<2x128xf32>
    %cst_7 = arith.constant 2.000000e-01 : f32
    %9 = vector.broadcast %cst_7 : f32 to vector<2x128xf32>
    %10 = arith.mulf %9, %8 : vector<2x128xf32>
    %11 = arith.maximumf %8, %10 : vector<2x128xf32>
    %12 = arith.mulf %11, %11 : vector<2x128xf32>
    %13 = tpu.concatenate %11, %12 in 0 : vector<2x128xf32>, vector<2x128xf32> -> vector<4x128xf32>
    %c0_8 = arith.constant 0 : index
    %c0_9 = arith.constant 0 : index
    %c0_10 = arith.constant 0 : index
    %14 = vector.load %arg3[%c0_8, %c0_9, %c0_10] : memref<4x128x128xf32, #tpu.memory_space<vmem>>, vector<1x128x128xf32>
    %15 = vector.shape_cast %14 : vector<1x128x128xf32> to vector<128x128xf32>
    %cst_11 = arith.constant dense<0.000000e+00> : vector<4x128xf32>
    %16 = tpu.matmul %13, %15, %cst_11 {dimension_numbers = #tpu.dot_dimension_numbers<[1], [0], [0], [1], [0, 0, 1, 1], [], []>} : vector<4x128xf32>, vector<128x128xf32>, vector<4x128xf32> -> vector<4x128xf32>
    %17 = vector.extract_strided_slice %16 {offsets = [0, 0], sizes = [2, 128], strides = [1, 1]} : vector<4x128xf32> to vector<2x128xf32>
    %18 = vector.extract_strided_slice %16 {offsets = [2, 0], sizes = [2, 128], strides = [1, 1]} : vector<4x128xf32> to vector<2x128xf32>
    %19 = arith.mulf %17, %17 : vector<2x128xf32>
    %20 = arith.subf %18, %19 : vector<2x128xf32>
    %21 = arith.subf %11, %17 : vector<2x128xf32>
    %cst_12 = arith.constant 9.99999974E-6 : f32
    %22 = vector.broadcast %cst_12 : f32 to vector<2x128xf32>
    %23 = arith.addf %20, %22 : vector<2x128xf32>
    %24 = math.rsqrt %23 : vector<2x128xf32>
    %25 = arith.mulf %21, %24 : vector<2x128xf32>
    %26 = arith.truncf %25 : vector<2x128xf32> to vector<2x128xbf16>
    %c1 = arith.constant 1 : index
    %c0_13 = arith.constant 0 : index
    %c0_14 = arith.constant 0 : index
    %27 = vector.load %arg2[%c1, %c0_13, %c0_14] : memref<5x128x128xbf16, #tpu.memory_space<vmem>>, vector<1x128x128xbf16>
    %28 = vector.shape_cast %27 : vector<1x128x128xbf16> to vector<128x128xbf16>
    %cst_15 = arith.constant dense<0.000000e+00> : vector<2x128xf32>
    %29 = tpu.matmul %26, %28, %cst_15 {dimension_numbers = #tpu.dot_dimension_numbers<[1], [0], [0], [1], [0, 0, 1, 1], [], []>} : vector<2x128xbf16>, vector<128x128xbf16>, vector<2x128xf32> -> vector<2x128xf32>
    %c1_16 = arith.constant 1 : index
    %c0_17 = arith.constant 0 : index
    %c0_18 = arith.constant 0 : index
    %30 = vector.load %arg4[%c1_16, %c0_17, %c0_18] : memref<5x1x128xf32, #tpu.memory_space<vmem>>, vector<1x1x128xf32>
    %31 = vector.shape_cast %30 : vector<1x1x128xf32> to vector<1x128xf32>
    %32 = vector.broadcast %31 : vector<1x128xf32> to vector<2x128xf32>
    %33 = arith.addf %29, %32 : vector<2x128xf32>
    %cst_19 = arith.constant 5.000000e-01 : f32
    %34 = vector.broadcast %cst_19 : f32 to vector<2x128xf32>
    %35 = arith.mulf %33, %34 : vector<2x128xf32>
    %cst_20 = arith.constant 0.707106769 : f32
    %36 = vector.broadcast %cst_20 : f32 to vector<2x128xf32>
    %37 = arith.mulf %33, %36 : vector<2x128xf32>
    %cst_21 = arith.constant 0.000000e+00 : f32
    %38 = vector.broadcast %cst_21 : f32 to vector<2x128xf32>
    %39 = arith.cmpf oge, %37, %38 : vector<2x128xf32>
    %cst_22 = arith.constant 1.000000e+00 : f32
    %cst_23 = arith.constant -1.000000e+00 : f32
    %40 = vector.broadcast %cst_22 : f32 to vector<2x128xf32>
    %41 = vector.broadcast %cst_23 : f32 to vector<2x128xf32>
    %42 = arith.select %39, %40, %41 : vector<2x128xi1>, vector<2x128xf32>
    %43 = math.absf %37 : vector<2x128xf32>
    %cst_24 = arith.constant 0.327591091 : f32
    %44 = vector.broadcast %cst_24 : f32 to vector<2x128xf32>
    %45 = arith.mulf %44, %43 : vector<2x128xf32>
    %cst_25 = arith.constant 1.000000e+00 : f32
    %46 = vector.broadcast %cst_25 : f32 to vector<2x128xf32>
    %47 = arith.addf %46, %45 : vector<2x128xf32>
    %cst_26 = arith.constant 1.000000e+00 : f32
    %48 = vector.broadcast %cst_26 : f32 to vector<2x128xf32>
    %49 = arith.divf %48, %47 : vector<2x128xf32>
    %cst_27 = arith.constant 1.06140542 : f32
    %50 = vector.broadcast %cst_27 : f32 to vector<2x128xf32>
    %51 = arith.mulf %50, %49 : vector<2x128xf32>
    %cst_28 = arith.constant -1.45315206 : f32
    %52 = vector.broadcast %cst_28 : f32 to vector<2x128xf32>
    %53 = arith.addf %51, %52 : vector<2x128xf32>
    %54 = arith.mulf %53, %49 : vector<2x128xf32>
    %cst_29 = arith.constant 1.42141378 : f32
    %55 = vector.broadcast %cst_29 : f32 to vector<2x128xf32>
    %56 = arith.addf %54, %55 : vector<2x128xf32>
    %57 = arith.mulf %56, %49 : vector<2x128xf32>
    %cst_30 = arith.constant -0.284496725 : f32
    %58 = vector.broadcast %cst_30 : f32 to vector<2x128xf32>
    %59 = arith.addf %57, %58 : vector<2x128xf32>
    %60 = arith.mulf %59, %49 : vector<2x128xf32>
    %cst_31 = arith.constant 0.254829586 : f32
    %61 = vector.broadcast %cst_31 : f32 to vector<2x128xf32>
    %62 = arith.addf %60, %61 : vector<2x128xf32>
    %63 = arith.mulf %62, %49 : vector<2x128xf32>
    %cst_32 = arith.constant 0.000000e+00 : f32
    %64 = vector.broadcast %cst_32 : f32 to vector<2x128xf32>
    %65 = arith.subf %64, %43 : vector<2x128xf32>
    %66 = arith.mulf %65, %43 : vector<2x128xf32>
    %67 = math.exp %66 : vector<2x128xf32>
    %68 = arith.mulf %63, %67 : vector<2x128xf32>
    %cst_33 = arith.constant 1.000000e+00 : f32
    %69 = vector.broadcast %cst_33 : f32 to vector<2x128xf32>
    %70 = arith.subf %69, %68 : vector<2x128xf32>
    %71 = arith.mulf %42, %70 : vector<2x128xf32>
    %cst_34 = arith.constant 1.000000e+00 : f32
    %72 = vector.broadcast %cst_34 : f32 to vector<2x128xf32>
    %73 = arith.addf %72, %71 : vector<2x128xf32>
    %74 = arith.mulf %35, %73 : vector<2x128xf32>
    %75 = arith.mulf %74, %74 : vector<2x128xf32>
    %76 = tpu.concatenate %74, %75 in 0 : vector<2x128xf32>, vector<2x128xf32> -> vector<4x128xf32>
    %c1_35 = arith.constant 1 : index
    %c0_36 = arith.constant 0 : index
    %c0_37 = arith.constant 0 : index
    %77 = vector.load %arg3[%c1_35, %c0_36, %c0_37] : memref<4x128x128xf32, #tpu.memory_space<vmem>>, vector<1x128x128xf32>
    %78 = vector.shape_cast %77 : vector<1x128x128xf32> to vector<128x128xf32>
    %cst_38 = arith.constant dense<0.000000e+00> : vector<4x128xf32>
    %79 = tpu.matmul %76, %78, %cst_38 {dimension_numbers = #tpu.dot_dimension_numbers<[1], [0], [0], [1], [0, 0, 1, 1], [], []>} : vector<4x128xf32>, vector<128x128xf32>, vector<4x128xf32> -> vector<4x128xf32>
    %80 = vector.extract_strided_slice %79 {offsets = [0, 0], sizes = [2, 128], strides = [1, 1]} : vector<4x128xf32> to vector<2x128xf32>
    %81 = vector.extract_strided_slice %79 {offsets = [2, 0], sizes = [2, 128], strides = [1, 1]} : vector<4x128xf32> to vector<2x128xf32>
    %82 = arith.mulf %80, %80 : vector<2x128xf32>
    %83 = arith.subf %81, %82 : vector<2x128xf32>
    %84 = arith.subf %74, %80 : vector<2x128xf32>
    %cst_39 = arith.constant 9.99999974E-6 : f32
    %85 = vector.broadcast %cst_39 : f32 to vector<2x128xf32>
    %86 = arith.addf %83, %85 : vector<2x128xf32>
    %87 = math.rsqrt %86 : vector<2x128xf32>
    %88 = arith.mulf %84, %87 : vector<2x128xf32>
    %89 = arith.truncf %88 : vector<2x128xf32> to vector<2x128xbf16>
    %c2 = arith.constant 2 : index
    %c0_40 = arith.constant 0 : index
    %c0_41 = arith.constant 0 : index
    %90 = vector.load %arg2[%c2, %c0_40, %c0_41] : memref<5x128x128xbf16, #tpu.memory_space<vmem>>, vector<1x128x128xbf16>
    %91 = vector.shape_cast %90 : vector<1x128x128xbf16> to vector<128x128xbf16>
    %cst_42 = arith.constant dense<0.000000e+00> : vector<2x128xf32>
    %92 = tpu.matmul %89, %91, %cst_42 {dimension_numbers = #tpu.dot_dimension_numbers<[1], [0], [0], [1], [0, 0, 1, 1], [], []>} : vector<2x128xbf16>, vector<128x128xbf16>, vector<2x128xf32> -> vector<2x128xf32>
    %c2_43 = arith.constant 2 : index
    %c0_44 = arith.constant 0 : index
    %c0_45 = arith.constant 0 : index
    %93 = vector.load %arg4[%c2_43, %c0_44, %c0_45] : memref<5x1x128xf32, #tpu.memory_space<vmem>>, vector<1x1x128xf32>
    %94 = vector.shape_cast %93 : vector<1x1x128xf32> to vector<1x128xf32>
    %95 = vector.broadcast %94 : vector<1x128xf32> to vector<2x128xf32>
    %96 = arith.addf %92, %95 : vector<2x128xf32>
    %cst_46 = arith.constant 5.000000e-01 : f32
    %97 = vector.broadcast %cst_46 : f32 to vector<2x128xf32>
    %98 = arith.mulf %96, %97 : vector<2x128xf32>
    %cst_47 = arith.constant 0.707106769 : f32
    %99 = vector.broadcast %cst_47 : f32 to vector<2x128xf32>
    %100 = arith.mulf %96, %99 : vector<2x128xf32>
    %cst_48 = arith.constant 0.000000e+00 : f32
    %101 = vector.broadcast %cst_48 : f32 to vector<2x128xf32>
    %102 = arith.cmpf oge, %100, %101 : vector<2x128xf32>
    %cst_49 = arith.constant 1.000000e+00 : f32
    %cst_50 = arith.constant -1.000000e+00 : f32
    %103 = vector.broadcast %cst_49 : f32 to vector<2x128xf32>
    %104 = vector.broadcast %cst_50 : f32 to vector<2x128xf32>
    %105 = arith.select %102, %103, %104 : vector<2x128xi1>, vector<2x128xf32>
    %106 = math.absf %100 : vector<2x128xf32>
    %cst_51 = arith.constant 0.327591091 : f32
    %107 = vector.broadcast %cst_51 : f32 to vector<2x128xf32>
    %108 = arith.mulf %107, %106 : vector<2x128xf32>
    %cst_52 = arith.constant 1.000000e+00 : f32
    %109 = vector.broadcast %cst_52 : f32 to vector<2x128xf32>
    %110 = arith.addf %109, %108 : vector<2x128xf32>
    %cst_53 = arith.constant 1.000000e+00 : f32
    %111 = vector.broadcast %cst_53 : f32 to vector<2x128xf32>
    %112 = arith.divf %111, %110 : vector<2x128xf32>
    %cst_54 = arith.constant 1.06140542 : f32
    %113 = vector.broadcast %cst_54 : f32 to vector<2x128xf32>
    %114 = arith.mulf %113, %112 : vector<2x128xf32>
    %cst_55 = arith.constant -1.45315206 : f32
    %115 = vector.broadcast %cst_55 : f32 to vector<2x128xf32>
    %116 = arith.addf %114, %115 : vector<2x128xf32>
    %117 = arith.mulf %116, %112 : vector<2x128xf32>
    %cst_56 = arith.constant 1.42141378 : f32
    %118 = vector.broadcast %cst_56 : f32 to vector<2x128xf32>
    %119 = arith.addf %117, %118 : vector<2x128xf32>
    %120 = arith.mulf %119, %112 : vector<2x128xf32>
    %cst_57 = arith.constant -0.284496725 : f32
    %121 = vector.broadcast %cst_57 : f32 to vector<2x128xf32>
    %122 = arith.addf %120, %121 : vector<2x128xf32>
    %123 = arith.mulf %122, %112 : vector<2x128xf32>
    %cst_58 = arith.constant 0.254829586 : f32
    %124 = vector.broadcast %cst_58 : f32 to vector<2x128xf32>
    %125 = arith.addf %123, %124 : vector<2x128xf32>
    %126 = arith.mulf %125, %112 : vector<2x128xf32>
    %cst_59 = arith.constant 0.000000e+00 : f32
    %127 = vector.broadcast %cst_59 : f32 to vector<2x128xf32>
    %128 = arith.subf %127, %106 : vector<2x128xf32>
    %129 = arith.mulf %128, %106 : vector<2x128xf32>
    %130 = math.exp %129 : vector<2x128xf32>
    %131 = arith.mulf %126, %130 : vector<2x128xf32>
    %cst_60 = arith.constant 1.000000e+00 : f32
    %132 = vector.broadcast %cst_60 : f32 to vector<2x128xf32>
    %133 = arith.subf %132, %131 : vector<2x128xf32>
    %134 = arith.mulf %105, %133 : vector<2x128xf32>
    %cst_61 = arith.constant 1.000000e+00 : f32
    %135 = vector.broadcast %cst_61 : f32 to vector<2x128xf32>
    %136 = arith.addf %135, %134 : vector<2x128xf32>
    %137 = arith.mulf %98, %136 : vector<2x128xf32>
    %138 = arith.mulf %137, %137 : vector<2x128xf32>
    %139 = tpu.concatenate %137, %138 in 0 : vector<2x128xf32>, vector<2x128xf32> -> vector<4x128xf32>
    %c2_62 = arith.constant 2 : index
    %c0_63 = arith.constant 0 : index
    %c0_64 = arith.constant 0 : index
    %140 = vector.load %arg3[%c2_62, %c0_63, %c0_64] : memref<4x128x128xf32, #tpu.memory_space<vmem>>, vector<1x128x128xf32>
    %141 = vector.shape_cast %140 : vector<1x128x128xf32> to vector<128x128xf32>
    %cst_65 = arith.constant dense<0.000000e+00> : vector<4x128xf32>
    %142 = tpu.matmul %139, %141, %cst_65 {dimension_numbers = #tpu.dot_dimension_numbers<[1], [0], [0], [1], [0, 0, 1, 1], [], []>} : vector<4x128xf32>, vector<128x128xf32>, vector<4x128xf32> -> vector<4x128xf32>
    %143 = vector.extract_strided_slice %142 {offsets = [0, 0], sizes = [2, 128], strides = [1, 1]} : vector<4x128xf32> to vector<2x128xf32>
    %144 = vector.extract_strided_slice %142 {offsets = [2, 0], sizes = [2, 128], strides = [1, 1]} : vector<4x128xf32> to vector<2x128xf32>
    %145 = arith.mulf %143, %143 : vector<2x128xf32>
    %146 = arith.subf %144, %145 : vector<2x128xf32>
    %147 = arith.subf %137, %143 : vector<2x128xf32>
    %cst_66 = arith.constant 9.99999974E-6 : f32
    %148 = vector.broadcast %cst_66 : f32 to vector<2x128xf32>
    %149 = arith.addf %146, %148 : vector<2x128xf32>
    %150 = math.rsqrt %149 : vector<2x128xf32>
    %151 = arith.mulf %147, %150 : vector<2x128xf32>
    %152 = arith.truncf %151 : vector<2x128xf32> to vector<2x128xbf16>
    %c3 = arith.constant 3 : index
    %c0_67 = arith.constant 0 : index
    %c0_68 = arith.constant 0 : index
    %153 = vector.load %arg2[%c3, %c0_67, %c0_68] : memref<5x128x128xbf16, #tpu.memory_space<vmem>>, vector<1x128x128xbf16>
    %154 = vector.shape_cast %153 : vector<1x128x128xbf16> to vector<128x128xbf16>
    %cst_69 = arith.constant dense<0.000000e+00> : vector<2x128xf32>
    %155 = tpu.matmul %152, %154, %cst_69 {dimension_numbers = #tpu.dot_dimension_numbers<[1], [0], [0], [1], [0, 0, 1, 1], [], []>} : vector<2x128xbf16>, vector<128x128xbf16>, vector<2x128xf32> -> vector<2x128xf32>
    %c3_70 = arith.constant 3 : index
    %c0_71 = arith.constant 0 : index
    %c0_72 = arith.constant 0 : index
    %156 = vector.load %arg4[%c3_70, %c0_71, %c0_72] : memref<5x1x128xf32, #tpu.memory_space<vmem>>, vector<1x1x128xf32>
    %157 = vector.shape_cast %156 : vector<1x1x128xf32> to vector<1x128xf32>
    %158 = vector.broadcast %157 : vector<1x128xf32> to vector<2x128xf32>
    %159 = arith.addf %155, %158 : vector<2x128xf32>
    %cst_73 = arith.constant 5.000000e-01 : f32
    %160 = vector.broadcast %cst_73 : f32 to vector<2x128xf32>
    %161 = arith.mulf %159, %160 : vector<2x128xf32>
    %cst_74 = arith.constant 0.707106769 : f32
    %162 = vector.broadcast %cst_74 : f32 to vector<2x128xf32>
    %163 = arith.mulf %159, %162 : vector<2x128xf32>
    %cst_75 = arith.constant 0.000000e+00 : f32
    %164 = vector.broadcast %cst_75 : f32 to vector<2x128xf32>
    %165 = arith.cmpf oge, %163, %164 : vector<2x128xf32>
    %cst_76 = arith.constant 1.000000e+00 : f32
    %cst_77 = arith.constant -1.000000e+00 : f32
    %166 = vector.broadcast %cst_76 : f32 to vector<2x128xf32>
    %167 = vector.broadcast %cst_77 : f32 to vector<2x128xf32>
    %168 = arith.select %165, %166, %167 : vector<2x128xi1>, vector<2x128xf32>
    %169 = math.absf %163 : vector<2x128xf32>
    %cst_78 = arith.constant 0.327591091 : f32
    %170 = vector.broadcast %cst_78 : f32 to vector<2x128xf32>
    %171 = arith.mulf %170, %169 : vector<2x128xf32>
    %cst_79 = arith.constant 1.000000e+00 : f32
    %172 = vector.broadcast %cst_79 : f32 to vector<2x128xf32>
    %173 = arith.addf %172, %171 : vector<2x128xf32>
    %cst_80 = arith.constant 1.000000e+00 : f32
    %174 = vector.broadcast %cst_80 : f32 to vector<2x128xf32>
    %175 = arith.divf %174, %173 : vector<2x128xf32>
    %cst_81 = arith.constant 1.06140542 : f32
    %176 = vector.broadcast %cst_81 : f32 to vector<2x128xf32>
    %177 = arith.mulf %176, %175 : vector<2x128xf32>
    %cst_82 = arith.constant -1.45315206 : f32
    %178 = vector.broadcast %cst_82 : f32 to vector<2x128xf32>
    %179 = arith.addf %177, %178 : vector<2x128xf32>
    %180 = arith.mulf %179, %175 : vector<2x128xf32>
    %cst_83 = arith.constant 1.42141378 : f32
    %181 = vector.broadcast %cst_83 : f32 to vector<2x128xf32>
    %182 = arith.addf %180, %181 : vector<2x128xf32>
    %183 = arith.mulf %182, %175 : vector<2x128xf32>
    %cst_84 = arith.constant -0.284496725 : f32
    %184 = vector.broadcast %cst_84 : f32 to vector<2x128xf32>
    %185 = arith.addf %183, %184 : vector<2x128xf32>
    %186 = arith.mulf %185, %175 : vector<2x128xf32>
    %cst_85 = arith.constant 0.254829586 : f32
    %187 = vector.broadcast %cst_85 : f32 to vector<2x128xf32>
    %188 = arith.addf %186, %187 : vector<2x128xf32>
    %189 = arith.mulf %188, %175 : vector<2x128xf32>
    %cst_86 = arith.constant 0.000000e+00 : f32
    %190 = vector.broadcast %cst_86 : f32 to vector<2x128xf32>
    %191 = arith.subf %190, %169 : vector<2x128xf32>
    %192 = arith.mulf %191, %169 : vector<2x128xf32>
    %193 = math.exp %192 : vector<2x128xf32>
    %194 = arith.mulf %189, %193 : vector<2x128xf32>
    %cst_87 = arith.constant 1.000000e+00 : f32
    %195 = vector.broadcast %cst_87 : f32 to vector<2x128xf32>
    %196 = arith.subf %195, %194 : vector<2x128xf32>
    %197 = arith.mulf %168, %196 : vector<2x128xf32>
    %cst_88 = arith.constant 1.000000e+00 : f32
    %198 = vector.broadcast %cst_88 : f32 to vector<2x128xf32>
    %199 = arith.addf %198, %197 : vector<2x128xf32>
    %200 = arith.mulf %161, %199 : vector<2x128xf32>
    %201 = arith.mulf %200, %200 : vector<2x128xf32>
    %202 = tpu.concatenate %200, %201 in 0 : vector<2x128xf32>, vector<2x128xf32> -> vector<4x128xf32>
    %c3_89 = arith.constant 3 : index
    %c0_90 = arith.constant 0 : index
    %c0_91 = arith.constant 0 : index
    %203 = vector.load %arg3[%c3_89, %c0_90, %c0_91] : memref<4x128x128xf32, #tpu.memory_space<vmem>>, vector<1x128x128xf32>
    %204 = vector.shape_cast %203 : vector<1x128x128xf32> to vector<128x128xf32>
    %cst_92 = arith.constant dense<0.000000e+00> : vector<4x128xf32>
    %205 = tpu.matmul %202, %204, %cst_92 {dimension_numbers = #tpu.dot_dimension_numbers<[1], [0], [0], [1], [0, 0, 1, 1], [], []>} : vector<4x128xf32>, vector<128x128xf32>, vector<4x128xf32> -> vector<4x128xf32>
    %206 = vector.extract_strided_slice %205 {offsets = [0, 0], sizes = [2, 128], strides = [1, 1]} : vector<4x128xf32> to vector<2x128xf32>
    %207 = vector.extract_strided_slice %205 {offsets = [2, 0], sizes = [2, 128], strides = [1, 1]} : vector<4x128xf32> to vector<2x128xf32>
    %208 = arith.mulf %206, %206 : vector<2x128xf32>
    %209 = arith.subf %207, %208 : vector<2x128xf32>
    %210 = arith.subf %200, %206 : vector<2x128xf32>
    %cst_93 = arith.constant 9.99999974E-6 : f32
    %211 = vector.broadcast %cst_93 : f32 to vector<2x128xf32>
    %212 = arith.addf %209, %211 : vector<2x128xf32>
    %213 = math.rsqrt %212 : vector<2x128xf32>
    %214 = arith.mulf %210, %213 : vector<2x128xf32>
    %215 = arith.truncf %214 : vector<2x128xf32> to vector<2x128xbf16>
    %c4 = arith.constant 4 : index
    %c0_94 = arith.constant 0 : index
    %c0_95 = arith.constant 0 : index
    %216 = vector.load %arg2[%c4, %c0_94, %c0_95] : memref<5x128x128xbf16, #tpu.memory_space<vmem>>, vector<1x128x128xbf16>
    %217 = vector.shape_cast %216 : vector<1x128x128xbf16> to vector<128x128xbf16>
    %cst_96 = arith.constant dense<0.000000e+00> : vector<2x128xf32>
    %218 = tpu.matmul %215, %217, %cst_96 {dimension_numbers = #tpu.dot_dimension_numbers<[1], [0], [0], [1], [0, 0, 1, 1], [], []>} : vector<2x128xbf16>, vector<128x128xbf16>, vector<2x128xf32> -> vector<2x128xf32>
    %c4_97 = arith.constant 4 : index
    %c0_98 = arith.constant 0 : index
    %c0_99 = arith.constant 0 : index
    %219 = vector.load %arg4[%c4_97, %c0_98, %c0_99] : memref<5x1x128xf32, #tpu.memory_space<vmem>>, vector<1x1x128xf32>
    %220 = vector.shape_cast %219 : vector<1x1x128xf32> to vector<1x128xf32>
    %221 = vector.broadcast %220 : vector<1x128xf32> to vector<2x128xf32>
    %222 = arith.addf %218, %221 : vector<2x128xf32>
    %223 = math.tanh %222 : vector<2x128xf32>
    %cst_100 = arith.constant 2.000000e+00 : f32
    %224 = vector.broadcast %cst_100 : f32 to vector<2x128xf32>
    %225 = arith.mulf %224, %223 : vector<2x128xf32>
    %c0_101 = arith.constant 0 : index
    %c0_102 = arith.constant 0 : index
    %226 = vector.load %arg1[%c0_101, %c0_102] : memref<2x128xf32, #tpu.memory_space<vmem>>, vector<2x128xf32>
    %227 = arith.mulf %225, %226 : vector<2x128xf32>
    %c0_103 = arith.constant 0 : index
    %c0_104 = arith.constant 0 : index
    %228 = vector.load %arg5[%c0_103, %c0_104] : memref<2x128xf32, #tpu.memory_space<vmem>>, vector<2x128xf32>
    tpu.vector_store %arg5[%c0_103, %c0_104], %227 {strides = array<i32>} : memref<2x128xf32, #tpu.memory_space<vmem>>, vector<2x128xf32>,
    return
  }
}

</mosaic_0001>

<llo_original>
// kernel: tpu_custom_call.1
$region0: #{tpu_custom_call.1}
  #allocation0 [shape = 'u32[]', space=smem, size = 0x4, offset = 0x4, fixed_abs, tag = 'smem constant byte address 0x4 - core index']
  #allocation1 [shape = 'u32[144,128]{1,0:T(1,128)}', space=vmem, size = 0x12000, scoped, tag = 'internal scratch']
  %s0 = inlined_call_operand.hbm [shape: f32[2,128], index: 0, kind: input, shape index: {}]
  %s1 = inlined_call_operand.vmem [shape: f32[2,128], index: 1, kind: input, shape index: {}]
  %s2 = inlined_call_operand.hbm [shape: bf16[5,128,128], index: 2, kind: input, shape index: {}]
  %s3 = inlined_call_operand.hbm [shape: f32[4,128,128], index: 3, kind: input, shape index: {}]
  %s4 = inlined_call_operand.vmem [shape: f32[5,1,128], index: 4, kind: input, shape index: {}]
  %s5 = inlined_call_operand.hbm [shape: f32[2,128], index: 5, kind: output, shape index: {}]
  %s6 = sld [smem:[#allocation0]]
  $region42: #{tpu_custom_call.1} parent=0
    _
  %s8 = ssub.s32 1, %s6
  %s9 = scalar_select 0, %s8, %s6
  $region1: #{tpu_custom_call.1} parent=0
    #allocation2 [shape = 'u8[1024]{0}', space=vmem, size = 0x400, scoped, tag = 'input window, operand 0, single buffered']
    #allocation3 [shape = 's32[1]{0}', space=sflag, size = 0x4, scoped, tag = 'scoped memory for tpu_custom_call.1']
    #allocation4 [shape = 's32[1]{0}', space=sflag, size = 0x4, scoped, tag = 'scoped memory for tpu_custom_call.1']
    #allocation5 [shape = 'u8[163840]{0}', space=vmem, size = 0x28000, scoped, tag = 'input window, operand 2, single buffered']
    #allocation6 [shape = 's32[1]{0}', space=sflag, size = 0x4, scoped, tag = 'scoped memory for tpu_custom_call.1']
    #allocation7 [shape = 'u8[262144]{0}', space=vmem, size = 0x40000, scoped, tag = 'input window, operand 3, single buffered']
    #allocation8 [shape = 'u8[1024]{0}', space=vmem, size = 0x400, scoped, tag = 'output window, operand 0, single buffered']
    %10 = vsyncpa [#allocation3], 0
    %11 = vsyncpa [#allocation6], 0
    %12 = vsyncpa [#allocation4], 0
    // Predicated region
    $region2: #{tpu_custom_call.1} parent=1 // pred_check
      _
    $region3: #{tpu_custom_call.1} parent=1 // pred_check_branch
      %14 = sbr.rel (0) target = $region5
    $region4: #{tpu_custom_call.1} parent=1 // pred_region
      %s16 = ssub.s32 32, 32
      %17 = vsyncadd [#allocation3], %s16
      %s19 = sshll.u32 [#allocation2], 4
      %s20 = int_to_ptr.vmem [resolvable:$true] %s19
      %22 = dma.hbm_to_vmem [thread:$0]  %s0, 32, %s20, [#allocation3]
    $region5: #{tpu_custom_call.1} parent=1 // pred_fallthru
      _
    // Predicated region
    $region6: #{tpu_custom_call.1} parent=1 // pred_check
      _
    $region7: #{tpu_custom_call.1} parent=1 // pred_check_branch
      %24 = sbr.rel (0) target = $region9
    $region8: #{tpu_custom_call.1} parent=1 // pred_region
      _
    $region9: #{tpu_custom_call.1} parent=1 // pred_fallthru
      _
    // Predicated region
    $region10: #{tpu_custom_call.1} parent=1 // pred_check
      _
    $region11: #{tpu_custom_call.1} parent=1 // pred_check_branch
      %26 = sbr.rel (0) target = $region13
    $region12: #{tpu_custom_call.1} parent=1 // pred_region
      %s28 = ssub.s32 5120, 5120
      %29 = vsyncadd [#allocation6], %s28
      %s30 = sshll.u32 [#allocation5], 4
      %s31 = int_to_ptr.vmem [resolvable:$true] %s30
      %36 = dma.hbm_to_vmem [thread:$0]  %s2, 5120, %s31, [#allocation6], 64, 64, 4
    $region13: #{tpu_custom_call.1} parent=1 // pred_fallthru
      _
    // Predicated region
    $region14: #{tpu_custom_call.1} parent=1 // pred_check
      _
    $region15: #{tpu_custom_call.1} parent=1 // pred_check_branch
      %38 = sbr.rel (0) target = $region17
    $region16: #{tpu_custom_call.1} parent=1 // pred_region
      %s40 = ssub.s32 8192, 8192
      %41 = vsyncadd [#allocation6], %s40
      %s42 = sshll.u32 [#allocation7], 4
      %s43 = int_to_ptr.vmem [resolvable:$true] %s42
      %48 = dma.hbm_to_vmem [thread:$0]  %s3, 8192, %s43, [#allocation6], 128, 128, 8
    $region17: #{tpu_custom_call.1} parent=1 // pred_fallthru
      _
    // Predicated region
    $region18: #{tpu_custom_call.1} parent=1 // pred_check
      _
    $region19: #{tpu_custom_call.1} parent=1 // pred_check_branch
      %50 = sbr.rel (0) target = $region21
    $region20: #{tpu_custom_call.1} parent=1 // pred_region
      _
    $region21: #{tpu_custom_call.1} parent=1 // pred_fallthru
      _
    // Predicated region
    $region22: #{tpu_custom_call.1} parent=1 // pred_check
      _
    $region23: #{tpu_custom_call.1} parent=1 // pred_check_branch
      %52 = sbr.rel (0) target = $region25
    $region24: #{tpu_custom_call.1} parent=1 // pred_region
      %53 = dma.done [#allocation3], 32
    $region25: #{tpu_custom_call.1} parent=1 // pred_fallthru
      _
    // Predicated region
    $region26: #{tpu_custom_call.1} parent=1 // pred_check
      _
    $region27: #{tpu_custom_call.1} parent=1 // pred_check_branch
      %55 = sbr.rel (0) target = $region29
    $region28: #{tpu_custom_call.1} parent=1 // pred_region
      %56 = dma.done [#allocation6], 5120
    $region29: #{tpu_custom_call.1} parent=1 // pred_fallthru
      _
    // Predicated region
    $region30: #{tpu_custom_call.1} parent=1 // pred_check
      _
    $region31: #{tpu_custom_call.1} parent=1 // pred_check_branch
      %58 = sbr.rel (0) target = $region33
    $region32: #{tpu_custom_call.1} parent=1 // pred_region
      %59 = dma.done [#allocation6], 8192
    $region33: #{tpu_custom_call.1} parent=1 // pred_fallthru
      _
    %v61 = vld [vmem:[#allocation2] sm:$0x3]
    %v62 = vpack.c.bf16 %v61, %v61
    %v63 = vld [vmem:[#allocation5] sm:$0xf]
    %v64 = vld [vmem:[#allocation5 + $0x4] sm:$0xf]
    %v65 = vld [vmem:[#allocation5 + $0x8] sm:$0xf]
    %v66 = vld [vmem:[#allocation5 + $0xc] sm:$0xf]
    %v67 = vld [vmem:[#allocation5 + $0x10] sm:$0xf]
    %v68 = vld [vmem:[#allocation5 + $0x14] sm:$0xf]
    %v69 = vld [vmem:[#allocation5 + $0x18] sm:$0xf]
    %v70 = vld [vmem:[#allocation5 + $0x1c] sm:$0xf]
    %v71 = vld [vmem:[#allocation5 + $0x20] sm:$0xf]
    %v72 = vld [vmem:[#allocation5 + $0x24] sm:$0xf]
    %v73 = vld [vmem:[#allocation5 + $0x28] sm:$0xf]
    %v74 = vld [vmem:[#allocation5 + $0x2c] sm:$0xf]
    %v75 = vld [vmem:[#allocation5 + $0x30] sm:$0xf]
    %v76 = vld [vmem:[#allocation5 + $0x34] sm:$0xf]
    %v77 = vld [vmem:[#allocation5 + $0x38] sm:$0xf]
    %v78 = vld [vmem:[#allocation5 + $0x3c] sm:$0xf]
    %v79 = vld [vmem:[%s4] sm:$0x1]
    %v81 = vlaneseq
    %v82 = vshrl.u32 %v81, 7
    %v83 = vsub.s32 0, %v82
    %v84 = vrot.slane %v79, %v83
    %v102 = vunpack.c.l.b16 %v63
    %v103 = vunpack.c.l.b16 %v64
    %v104 = vunpack.c.l.b16 %v65
    %v105 = vunpack.c.l.b16 %v66
    %v106 = vunpack.c.l.b16 %v67
    %v107 = vunpack.c.l.b16 %v68
    %v108 = vunpack.c.l.b16 %v69
    %v109 = vunpack.c.l.b16 %v70
    %v110 = vunpack.c.l.b16 %v71
    %v111 = vunpack.c.l.b16 %v72
    %v112 = vunpack.c.l.b16 %v73
    %v113 = vunpack.c.l.b16 %v74
    %v114 = vunpack.c.l.b16 %v75
    %v115 = vunpack.c.l.b16 %v76
    %v116 = vunpack.c.l.b16 %v77
    %v117 = vunpack.c.l.b16 %v78
    %v118 = vpack.c.b16 %v103, %v102
    %v119 = vpack.c.b16 %v105, %v104
    %v120 = vpack.c.b16 %v107, %v106
    %v121 = vpack.c.b16 %v109, %v108
    %v122 = vpack.c.b16 %v111, %v110
    %v123 = vpack.c.b16 %v113, %v112
    %v124 = vpack.c.b16 %v115, %v114
    %v125 = vpack.c.b16 %v117, %v116
    %134 = vmatprep.subr.bf16.mxu0 0
    %135 = vmatpush1.bf16.msra.mxu0 %v118
    %136 = vmatprep.subr.bf16.mxu0 0
    %137 = vmatpush1.bf16.msra.mxu0 %v119
    %138 = vmatprep.subr.bf16.mxu0 0
    %139 = vmatpush1.bf16.msra.mxu0 %v120
    %140 = vmatprep.subr.bf16.mxu0 0
    %141 = vmatpush1.bf16.msra.mxu0 %v121
    %142 = vmatprep.subr.bf16.mxu0 0
    %143 = vmatpush1.bf16.msra.mxu0 %v122
    %144 = vmatprep.subr.bf16.mxu0 0
    %145 = vmatpush1.bf16.msra.mxu0 %v123
    %146 = vmatprep.subr.bf16.mxu0 0
    %147 = vmatpush1.bf16.msra.mxu0 %v124
    %148 = vmatprep.subr.bf16.mxu0 0
    %149 = vmatpush1.bf16.msra.mxu0 %v125
    %150 = vmatprep.subr.bf16.mxu0 0
    %151 = vmatpush1.bf16.msra.mxu0 0
    %152 = vmatprep.subr.bf16.mxu0 0
    %153 = vmatpush1.bf16.msra.mxu0 0
    %154 = vmatprep.subr.bf16.mxu0 0
    %155 = vmatpush1.bf16.msra.mxu0 0
    %156 = vmatprep.subr.bf16.mxu0 0
    %157 = vmatpush1.bf16.msra.mxu0 0
    %158 = vmatprep.subr.bf16.mxu0 0
    %159 = vmatpush1.bf16.msra.mxu0 0
    %160 = vmatprep.subr.bf16.mxu0 0
    %161 = vmatpush1.bf16.msra.mxu0 0
    %162 = vmatprep.subr.bf16.mxu0 0
    %163 = vmatpush1.bf16.msra.mxu0 0
    %164 = vmatprep.subr.bf16.mxu0 0
    %165 = vmatpush1.bf16.msra.mxu0 0
    %166 = vmatprep.mubr.bf16.mxu0 0
    %167 = vmatmul.mubr.bf16.gmra.mrb[0].mxu0 %v62
    %v168 = vpop.f32.mrb[0].mxu0
    %v169 = vadd.f32 %v84, %v168
    %v170 = vpop.f32.mrb[0].mxu0
    %v171 = vpop.f32.mrb[0].mxu0
    %v172 = vpop.f32.mrb[0].mxu0
    %173 = vdwg.mxu0
    %v174 = vmul.f32 %v169, 0.2
    %v175 = vmax.f32 %v169, %v174
    %v176 = vmul.f32 %v175, %v175
    %v178 = vrot.slane %v176, 6
    %vm180 = vcmask 1041408
    %v181 = vsel %vm180, %v175, %v178
    %v182 = vld [vmem:[#allocation7] sm:$0xff]
    %v183 = vld [vmem:[#allocation7 + $0x8] sm:$0xff]
    %v184 = vld [vmem:[#allocation7 + $0x10] sm:$0xff]
    %v185 = vld [vmem:[#allocation7 + $0x18] sm:$0xff]
    %v186 = vld [vmem:[#allocation7 + $0x20] sm:$0xff]
    %v187 = vld [vmem:[#allocation7 + $0x28] sm:$0xff]
    %v188 = vld [vmem:[#allocation7 + $0x30] sm:$0xff]
    %v189 = vld [vmem:[#allocation7 + $0x38] sm:$0xff]
    %v190 = vld [vmem:[#allocation7 + $0x40] sm:$0xff]
    %v191 = vld [vmem:[#allocation7 + $0x48] sm:$0xff]
    %v192 = vld [vmem:[#allocation7 + $0x50] sm:$0xff]
    %v193 = vld [vmem:[#allocation7 + $0x58] sm:$0xff]
    %v194 = vld [vmem:[#allocation7 + $0x60] sm:$0xff]
    %v195 = vld [vmem:[#allocation7 + $0x68] sm:$0xff]
    %v196 = vld [vmem:[#allocation7 + $0x70] sm:$0xff]
    %v197 = vld [vmem:[#allocation7 + $0x78] sm:$0xff]
    %198 = vmatprep.subr.mxu0 0.0
    %199 = vmatpush1.msra.mxu0 %v182
    %200 = vmatprep.subr.mxu0 0.0
    %201 = vmatpush1.msra.mxu0 %v183
    %202 = vmatprep.subr.mxu0 0.0
    %203 = vmatpush1.msra.mxu0 %v184
    %204 = vmatprep.subr.mxu0 0.0
    %205 = vmatpush1.msra.mxu0 %v185
    %206 = vmatprep.subr.mxu0 0.0
    %207 = vmatpush1.msra.mxu0 %v186
    %208 = vmatprep.subr.mxu0 0.0
    %209 = vmatpush1.msra.mxu0 %v187
    %210 = vmatprep.subr.mxu0 0.0
    %211 = vmatpush1.msra.mxu0 %v188
    %212 = vmatprep.subr.mxu0 0.0
    %213 = vmatpush1.msra.mxu0 %v189
    %214 = vmatprep.subr.mxu0 0.0
    %215 = vmatpush1.msra.mxu0 %v190
    %216 = vmatprep.subr.mxu0 0.0
    %217 = vmatpush1.msra.mxu0 %v191
    %218 = vmatprep.subr.mxu0 0.0
    %219 = vmatpush1.msra.mxu0 %v192
    %220 = vmatprep.subr.mxu0 0.0
    %221 = vmatpush1.msra.mxu0 %v193
    %222 = vmatprep.subr.mxu0 0.0
    %223 = vmatpush1.msra.mxu0 %v194
    %224 = vmatprep.subr.mxu0 0.0
    %225 = vmatpush1.msra.mxu0 %v195
    %226 = vmatprep.subr.mxu0 0.0
    %227 = vmatpush1.msra.mxu0 %v196
    %228 = vmatprep.subr.mxu0 0.0
    %229 = vmatpush1.msra.mxu0 %v197
    %230 = vmatprep.subr.mxu0 0.0
    %231 = vmatpush1.msra.mxu0 0.0
    %232 = vmatprep.subr.mxu0 0.0
    %233 = vmatpush1.msra.mxu0 0.0
    %234 = vmatprep.subr.mxu0 0.0
    %235 = vmatpush1.msra.mxu0 0.0
    %236 = vmatprep.subr.mxu0 0.0
    %237 = vmatpush1.msra.mxu0 0.0
    %238 = vmatprep.subr.mxu0 0.0
    %239 = vmatpush1.msra.mxu0 0.0
    %240 = vmatprep.subr.mxu0 0.0
    %241 = vmatpush1.msra.mxu0 0.0
    %242 = vmatprep.subr.mxu0 0.0
    %243 = vmatpush1.msra.mxu0 0.0
    %244 = vmatprep.subr.mxu0 0.0
    %245 = vmatpush1.msra.mxu0 0.0
    %246 = vmatprep.subr.mxu0 0.0
    %247 = vmatpush1.msra.mxu0 0.0
    %248 = vmatprep.subr.mxu0 0.0
    %249 = vmatpush1.msra.mxu0 0.0
    %250 = vmatprep.subr.mxu0 0.0
    %251 = vmatpush1.msra.mxu0 0.0
    %252 = vmatprep.subr.mxu0 0.0
    %253 = vmatpush1.msra.mxu0 0.0
    %254 = vmatprep.subr.mxu0 0.0
    %255 = vmatpush1.msra.mxu0 0.0
    %256 = vmatprep.subr.mxu0 0.0
    %257 = vmatpush1.msra.mxu0 0.0
    %258 = vmatprep.subr.mxu0 0.0
    %259 = vmatpush1.msra.mxu0 0.0
    %260 = vmatprep.subr.mxu0 0.0
    %261 = vmatpush1.msra.mxu0 0.0
    %262 = vmatprep.mubr.f32.mxu0 0.0
    %263 = vmatmul.mubr.f32.gmra.mrb[0].mxu0 %v181
    %v264 = vpop.f32.mrb[0].mxu0
    %v265 = vadd.f32 0.0, %v264
    %v266 = vpop.f32.mrb[0].mxu0
    %267 = vdwg.mxu0
    %v268 = vmul.f32 %v265, %v265
    %v270 = vrot.slane %v268, 6
    %v272 = vsub.f32 %v265, %v270
    %v273 = vsub.f32 %v175, %v265
    %v274 = vadd.f32 %v272, 1e-05
    %v275 = vrsqrt.pop %v274
    %v277 = vrot.slane %v275, 2
    %v279 = vmul.f32 %v273, %v277
    %v280 = vpack.c.bf16 %v279, %v279
    %s281 = scalar_lea.vmem [#allocation5], 64
    %v282 = vld [vmem:[%s281] sm:$0xf]
    %v283 = vld [vmem:[%s281 + $0x4] sm:$0xf]
    %v284 = vld [vmem:[%s281 + $0x8] sm:$0xf]
    %v285 = vld [vmem:[%s281 + $0xc] sm:$0xf]
    %v286 = vld [vmem:[%s281 + $0x10] sm:$0xf]
    %v287 = vld [vmem:[%s281 + $0x14] sm:$0xf]
    %v288 = vld [vmem:[%s281 + $0x18] sm:$0xf]
    %v289 = vld [vmem:[%s281 + $0x1c] sm:$0xf]
    %v290 = vld [vmem:[%s281 + $0x20] sm:$0xf]
    %v291 = vld [vmem:[%s281 + $0x24] sm:$0xf]
    %v292 = vld [vmem:[%s281 + $0x28] sm:$0xf]
    %v293 = vld [vmem:[%s281 + $0x2c] sm:$0xf]
    %v294 = vld [vmem:[%s281 + $0x30] sm:$0xf]
    %v295 = vld [vmem:[%s281 + $0x34] sm:$0xf]
    %v296 = vld [vmem:[%s281 + $0x38] sm:$0xf]
    %v297 = vld [vmem:[%s281 + $0x3c] sm:$0xf]
    %s298 = scalar_lea.vmem %s4, 1
    %v299 = vld [vmem:[%s298] sm:$0x1]
    %v301 = vlaneseq
    %v302 = vshrl.u32 %v301, 7
    %v303 = vsub.s32 0, %v302
    %v304 = vrot.slane %v299, %v303
    %v322 = vunpack.c.l.b16 %v282
    %v323 = vunpack.c.l.b16 %v283
    %v324 = vunpack.c.l.b16 %v284
    %v325 = vunpack.c.l.b16 %v285
    %v326 = vunpack.c.l.b16 %v286
    %v327 = vunpack.c.l.b16 %v287
    %v328 = vunpack.c.l.b16 %v288
    %v329 = vunpack.c.l.b16 %v289
    %v330 = vunpack.c.l.b16 %v290
    %v331 = vunpack.c.l.b16 %v291
    %v332 = vunpack.c.l.b16 %v292
    %v333 = vunpack.c.l.b16 %v293
    %v334 = vunpack.c.l.b16 %v294
    %v335 = vunpack.c.l.b16 %v295
    %v336 = vunpack.c.l.b16 %v296
    %v337 = vunpack.c.l.b16 %v297
    %v338 = vpack.c.b16 %v323, %v322
    %v339 = vpack.c.b16 %v325, %v324
    %v340 = vpack.c.b16 %v327, %v326
    %v341 = vpack.c.b16 %v329, %v328
    %v342 = vpack.c.b16 %v331, %v330
    %v343 = vpack.c.b16 %v333, %v332
    %v344 = vpack.c.b16 %v335, %v334
    %v345 = vpack.c.b16 %v337, %v336
    %354 = vmatprep.subr.bf16.mxu0 0
    %355 = vmatpush1.bf16.msra.mxu0 %v338
    %356 = vmatprep.subr.bf16.mxu0 0
    %357 = vmatpush1.bf16.msra.mxu0 %v339
    %358 = vmatprep.subr.bf16.mxu0 0
    %359 = vmatpush1.bf16.msra.mxu0 %v340
    %360 = vmatprep.subr.bf16.mxu0 0
    %361 = vmatpush1.bf16.msra.mxu0 %v341
    %362 = vmatprep.subr.bf16.mxu0 0
    %363 = vmatpush1.bf16.msra.mxu0 %v342
    %364 = vmatprep.subr.bf16.mxu0 0
    %365 = vmatpush1.bf16.msra.mxu0 %v343
    %366 = vmatprep.subr.bf16.mxu0 0
    %367 = vmatpush1.bf16.msra.mxu0 %v344
    %368 = vmatprep.subr.bf16.mxu0 0
    %369 = vmatpush1.bf16.msra.mxu0 %v345
    %370 = vmatprep.subr.bf16.mxu0 0
    %371 = vmatpush1.bf16.msra.mxu0 0
    %372 = vmatprep.subr.bf16.mxu0 0
    %373 = vmatpush1.bf16.msra.mxu0 0
    %374 = vmatprep.subr.bf16.mxu0 0
    %375 = vmatpush1.bf16.msra.mxu0 0
    %376 = vmatprep.subr.bf16.mxu0 0
    %377 = vmatpush1.bf16.msra.mxu0 0
    %378 = vmatprep.subr.bf16.mxu0 0
    %379 = vmatpush1.bf16.msra.mxu0 0
    %380 = vmatprep.subr.bf16.mxu0 0
    %381 = vmatpush1.bf16.msra.mxu0 0
    %382 = vmatprep.subr.bf16.mxu0 0
    %383 = vmatpush1.bf16.msra.mxu0 0
    %384 = vmatprep.subr.bf16.mxu0 0
    %385 = vmatpush1.bf16.msra.mxu0 0
    %386 = vmatprep.mubr.bf16.mxu0 0
    %387 = vmatmul.mubr.bf16.gmra.mrb[0].mxu0 %v280
    %v388 = vpop.f32.mrb[0].mxu0
    %v389 = vadd.f32 %v304, %v388
    %v390 = vpop.f32.mrb[0].mxu0
    %v391 = vpop.f32.mrb[0].mxu0
    %v392 = vpop.f32.mrb[0].mxu0
    %393 = vdwg.mxu0
    %v394 = vmul.f32 %v389, 0.5
    %v395 = vmul.f32 %v389, 0.70710677
    %vm396 = vcmp.ge.f32.partialorder %v395, 0.0
    %v397 = vsel %vm396, 1.0, -1.0
    %v398 = vand.u32 2147483647, %v395
    %v399 = vmul.f32 %v398, 0.3275911
    %v400 = vadd.f32 %v399, 1.0
    %v401 = vrcp.pop %v400
    %v402 = vmul.f32 1.0, %v401
    %v403 = vmul.f32 %v402, 1.0614054
    %v404 = vadd.f32 %v403, -1.4531521
    %v405 = vmul.f32 %v404, %v402
    %v406 = vadd.f32 %v405, 1.4214138
    %v407 = vmul.f32 %v406, %v402
    %v408 = vadd.f32 %v407, -0.28449672
    %v409 = vmul.f32 %v408, %v402
    %v410 = vadd.f32 %v409, 0.2548296
    %v411 = vmul.f32 %v410, %v402
    %v412 = vsub.f32 0.0, %v398
    %v413 = vmul.f32 %v412, %v398
    %v414 = vmul.f32 %v413, 1.442695
    %v415 = vpow.pop %v414
    %v416 = vmul.f32 %v411, %v415
    %v417 = vsub.f32 1.0, %v416
    %v418 = vmul.f32 %v397, %v417
    %v419 = vadd.f32 %v418, 1.0
    %v420 = vmul.f32 %v394, %v419
    %v421 = vmul.f32 %v420, %v420
    %v423 = vrot.slane %v421, 6
    %v425 = vsel %vm180, %v420, %v423
    %s426 = scalar_lea.vmem [#allocation7], 128
    %v427 = vld [vmem:[%s426] sm:$0xff]
    %v428 = vld [vmem:[%s426 + $0x8] sm:$0xff]
    %v429 = vld [vmem:[%s426 + $0x10] sm:$0xff]
    %v430 = vld [vmem:[%s426 + $0x18] sm:$0xff]
    %v431 = vld [vmem:[%s426 + $0x20] sm:$0xff]
    %v432 = vld [vmem:[%s426 + $0x28] sm:$0xff]
    %v433 = vld [vmem:[%s426 + $0x30] sm:$0xff]
    %v434 = vld [vmem:[%s426 + $0x38] sm:$0xff]
    %v435 = vld [vmem:[%s426 + $0x40] sm:$0xff]
    %v436 = vld [vmem:[%s426 + $0x48] sm:$0xff]
    %v437 = vld [vmem:[%s426 + $0x50] sm:$0xff]
    %v438 = vld [vmem:[%s426 + $0x58] sm:$0xff]
    %v439 = vld [vmem:[%s426 + $0x60] sm:$0xff]
    %v440 = vld [vmem:[%s426 + $0x68] sm:$0xff]
    %v441 = vld [vmem:[%s426 + $0x70] sm:$0xff]
    %v442 = vld [vmem:[%s426 + $0x78] sm:$0xff]
    %443 = vmatprep.subr.mxu0 0.0
    %444 = vmatpush1.msra.mxu0 %v427
    %445 = vmatprep.subr.mxu0 0.0
    %446 = vmatpush1.msra.mxu0 %v428
    %447 = vmatprep.subr.mxu0 0.0
    %448 = vmatpush1.msra.mxu0 %v429
    %449 = vmatprep.subr.mxu0 0.0
    %450 = vmatpush1.msra.mxu0 %v430
    %451 = vmatprep.subr.mxu0 0.0
    %452 = vmatpush1.msra.mxu0 %v431
    %453 = vmatprep.subr.mxu0 0.0
    %454 = vmatpush1.msra.mxu0 %v432
    %455 = vmatprep.subr.mxu0 0.0
    %456 = vmatpush1.msra.mxu0 %v433
    %457 = vmatprep.subr.mxu0 0.0
    %458 = vmatpush1.msra.mxu0 %v434
    %459 = vmatprep.subr.mxu0 0.0
    %460 = vmatpush1.msra.mxu0 %v435
    %461 = vmatprep.subr.mxu0 0.0
    %462 = vmatpush1.msra.mxu0 %v436
    %463 = vmatprep.subr.mxu0 0.0
    %464 = vmatpush1.msra.mxu0 %v437
    %465 = vmatprep.subr.mxu0 0.0
    %466 = vmatpush1.msra.mxu0 %v438
    %467 = vmatprep.subr.mxu0 0.0
    %468 = vmatpush1.msra.mxu0 %v439
    %469 = vmatprep.subr.mxu0 0.0
    %470 = vmatpush1.msra.mxu0 %v440
    %471 = vmatprep.subr.mxu0 0.0
    %472 = vmatpush1.msra.mxu0 %v441
    %473 = vmatprep.subr.mxu0 0.0
    %474 = vmatpush1.msra.mxu0 %v442
    %475 = vmatprep.subr.mxu0 0.0
    %476 = vmatpush1.msra.mxu0 0.0
    %477 = vmatprep.subr.mxu0 0.0
    %478 = vmatpush1.msra.mxu0 0.0
    %479 = vmatprep.subr.mxu0 0.0
    %480 = vmatpush1.msra.mxu0 0.0
    %481 = vmatprep.subr.mxu0 0.0
    %482 = vmatpush1.msra.mxu0 0.0
    %483 = vmatprep.subr.mxu0 0.0
    %484 = vmatpush1.msra.mxu0 0.0
    %485 = vmatprep.subr.mxu0 0.0
    %486 = vmatpush1.msra.mxu0 0.0
    %487 = vmatprep.subr.mxu0 0.0
    %488 = vmatpush1.msra.mxu0 0.0
    %489 = vmatprep.subr.mxu0 0.0
    %490 = vmatpush1.msra.mxu0 0.0
    %491 = vmatprep.subr.mxu0 0.0
    %492 = vmatpush1.msra.mxu0 0.0
    %493 = vmatprep.subr.mxu0 0.0
    %494 = vmatpush1.msra.mxu0 0.0
    %495 = vmatprep.subr.mxu0 0.0
    %496 = vmatpush1.msra.mxu0 0.0
    %497 = vmatprep.subr.mxu0 0.0
    %498 = vmatpush1.msra.mxu0 0.0
    %499 = vmatprep.subr.mxu0 0.0
    %500 = vmatpush1.msra.mxu0 0.0
    %501 = vmatprep.subr.mxu0 0.0
    %502 = vmatpush1.msra.mxu0 0.0
    %503 = vmatprep.subr.mxu0 0.0
    %504 = vmatpush1.msra.mxu0 0.0
    %505 = vmatprep.subr.mxu0 0.0
    %506 = vmatpush1.msra.mxu0 0.0
    %507 = vmatprep.mubr.f32.mxu0 0.0
    %508 = vmatmul.mubr.f32.gmra.mrb[0].mxu0 %v425
    %v509 = vpop.f32.mrb[0].mxu0
    %v510 = vadd.f32 0.0, %v509
    %v511 = vpop.f32.mrb[0].mxu0
    %512 = vdwg.mxu0
    %v513 = vmul.f32 %v510, %v510
    %v515 = vrot.slane %v513, 6
    %v517 = vsub.f32 %v510, %v515
    %v518 = vsub.f32 %v420, %v510
    %v519 = vadd.f32 %v517, 1e-05
    %v520 = vrsqrt.pop %v519
    %v522 = vrot.slane %v520, 2
    %v524 = vmul.f32 %v518, %v522
    %v525 = vpack.c.bf16 %v524, %v524
    %s526 = scalar_lea.vmem [#allocation5], 128
    %v527 = vld [vmem:[%s526] sm:$0xf]
    %v528 = vld [vmem:[%s526 + $0x4] sm:$0xf]
    %v529 = vld [vmem:[%s526 + $0x8] sm:$0xf]
    %v530 = vld [vmem:[%s526 + $0xc] sm:$0xf]
    %v531 = vld [vmem:[%s526 + $0x10] sm:$0xf]
    %v532 = vld [vmem:[%s526 + $0x14] sm:$0xf]
    %v533 = vld [vmem:[%s526 + $0x18] sm:$0xf]
    %v534 = vld [vmem:[%s526 + $0x1c] sm:$0xf]
    %v535 = vld [vmem:[%s526 + $0x20] sm:$0xf]
    %v536 = vld [vmem:[%s526 + $0x24] sm:$0xf]
    %v537 = vld [vmem:[%s526 + $0x28] sm:$0xf]
    %v538 = vld [vmem:[%s526 + $0x2c] sm:$0xf]
    %v539 = vld [vmem:[%s526 + $0x30] sm:$0xf]
    %v540 = vld [vmem:[%s526 + $0x34] sm:$0xf]
    %v541 = vld [vmem:[%s526 + $0x38] sm:$0xf]
    %v542 = vld [vmem:[%s526 + $0x3c] sm:$0xf]
    %s543 = scalar_lea.vmem %s4, 2
    %v544 = vld [vmem:[%s543] sm:$0x1]
    %v546 = vlaneseq
    %v547 = vshrl.u32 %v546, 7
    %v548 = vsub.s32 0, %v547
    %v549 = vrot.slane %v544, %v548
    %v567 = vunpack.c.l.b16 %v527
    %v568 = vunpack.c.l.b16 %v528
    %v569 = vunpack.c.l.b16 %v529
    %v570 = vunpack.c.l.b16 %v530
    %v571 = vunpack.c.l.b16 %v531
    %v572 = vunpack.c.l.b16 %v532
    %v573 = vunpack.c.l.b16 %v533
    %v574 = vunpack.c.l.b16 %v534
    %v575 = vunpack.c.l.b16 %v535
    %v576 = vunpack.c.l.b16 %v536
    %v577 = vunpack.c.l.b16 %v537
    %v578 = vunpack.c.l.b16 %v538
    %v579 = vunpack.c.l.b16 %v539
    %v580 = vunpack.c.l.b16 %v540
    %v581 = vunpack.c.l.b16 %v541
    %v582 = vunpack.c.l.b16 %v542
    %v583 = vpack.c.b16 %v568, %v567
    %v584 = vpack.c.b16 %v570, %v569
    %v585 = vpack.c.b16 %v572, %v571
    %v586 = vpack.c.b16 %v574, %v573
    %v587 = vpack.c.b16 %v576, %v575
    %v588 = vpack.c.b16 %v578, %v577
    %v589 = vpack.c.b16 %v580, %v579
    %v590 = vpack.c.b16 %v582, %v581
    %599 = vmatprep.subr.bf16.mxu0 0
    %600 = vmatpush1.bf16.msra.mxu0 %v583
    %601 = vmatprep.subr.bf16.mxu0 0
    %602 = vmatpush1.bf16.msra.mxu0 %v584
    %603 = vmatprep.subr.bf16.mxu0 0
    %604 = vmatpush1.bf16.msra.mxu0 %v585
    %605 = vmatprep.subr.bf16.mxu0 0
    %606 = vmatpush1.bf16.msra.mxu0 %v586
    %607 = vmatprep.subr.bf16.mxu0 0
    %608 = vmatpush1.bf16.msra.mxu0 %v587
    %609 = vmatprep.subr.bf16.mxu0 0
    %610 = vmatpush1.bf16.msra.mxu0 %v588
    %611 = vmatprep.subr.bf16.mxu0 0
    %612 = vmatpush1.bf16.msra.mxu0 %v589
    %613 = vmatprep.subr.bf16.mxu0 0
    %614 = vmatpush1.bf16.msra.mxu0 %v590
    %615 = vmatprep.subr.bf16.mxu0 0
    %616 = vmatpush1.bf16.msra.mxu0 0
    %617 = vmatprep.subr.bf16.mxu0 0
    %618 = vmatpush1.bf16.msra.mxu0 0
    %619 = vmatprep.subr.bf16.mxu0 0
    %620 = vmatpush1.bf16.msra.mxu0 0
    %621 = vmatprep.subr.bf16.mxu0 0
    %622 = vmatpush1.bf16.msra.mxu0 0
    %623 = vmatprep.subr.bf16.mxu0 0
    %624 = vmatpush1.bf16.msra.mxu0 0
    %625 = vmatprep.subr.bf16.mxu0 0
    %626 = vmatpush1.bf16.msra.mxu0 0
    %627 = vmatprep.subr.bf16.mxu0 0
    %628 = vmatpush1.bf16.msra.mxu0 0
    %629 = vmatprep.subr.bf16.mxu0 0
    %630 = vmatpush1.bf16.msra.mxu0 0
    %631 = vmatprep.mubr.bf16.mxu0 0
    %632 = vmatmul.mubr.bf16.gmra.mrb[0].mxu0 %v525
    %v633 = vpop.f32.mrb[0].mxu0
    %v634 = vadd.f32 %v549, %v633
    %v635 = vpop.f32.mrb[0].mxu0
    %v636 = vpop.f32.mrb[0].mxu0
    %v637 = vpop.f32.mrb[0].mxu0
    %638 = vdwg.mxu0
    %v639 = vmul.f32 %v634, 0.5
    %v640 = vmul.f32 %v634, 0.70710677
    %vm641 = vcmp.ge.f32.partialorder %v640, 0.0
    %v642 = vsel %vm641, 1.0, -1.0
    %v643 = vand.u32 2147483647, %v640
    %v644 = vmul.f32 %v643, 0.3275911
    %v645 = vadd.f32 %v644, 1.0
    %v646 = vrcp.pop %v645
    %v647 = vmul.f32 1.0, %v646
    %v648 = vmul.f32 %v647, 1.0614054
    %v649 = vadd.f32 %v648, -1.4531521
    %v650 = vmul.f32 %v649, %v647
    %v651 = vadd.f32 %v650, 1.4214138
    %v652 = vmul.f32 %v651, %v647
    %v653 = vadd.f32 %v652, -0.28449672
    %v654 = vmul.f32 %v653, %v647
    %v655 = vadd.f32 %v654, 0.2548296
    %v656 = vmul.f32 %v655, %v647
    %v657 = vsub.f32 0.0, %v643
    %v658 = vmul.f32 %v657, %v643
    %v659 = vmul.f32 %v658, 1.442695
    %v660 = vpow.pop %v659
    %v661 = vmul.f32 %v656, %v660
    %v662 = vsub.f32 1.0, %v661
    %v663 = vmul.f32 %v642, %v662
    %v664 = vadd.f32 %v663, 1.0
    %v665 = vmul.f32 %v639, %v664
    %v666 = vmul.f32 %v665, %v665
    %v668 = vrot.slane %v666, 6
    %v670 = vsel %vm180, %v665, %v668
    %s671 = scalar_lea.vmem [#allocation7], 256
    %v672 = vld [vmem:[%s671] sm:$0xff]
    %v673 = vld [vmem:[%s671 + $0x8] sm:$0xff]
    %v674 = vld [vmem:[%s671 + $0x10] sm:$0xff]
    %v675 = vld [vmem:[%s671 + $0x18] sm:$0xff]
    %v676 = vld [vmem:[%s671 + $0x20] sm:$0xff]
    %v677 = vld [vmem:[%s671 + $0x28] sm:$0xff]
    %v678 = vld [vmem:[%s671 + $0x30] sm:$0xff]
    %v679 = vld [vmem:[%s671 + $0x38] sm:$0xff]
    %v680 = vld [vmem:[%s671 + $0x40] sm:$0xff]
    %v681 = vld [vmem:[%s671 + $0x48] sm:$0xff]
    %v682 = vld [vmem:[%s671 + $0x50] sm:$0xff]
    %v683 = vld [vmem:[%s671 + $0x58] sm:$0xff]
    %v684 = vld [vmem:[%s671 + $0x60] sm:$0xff]
    %v685 = vld [vmem:[%s671 + $0x68] sm:$0xff]
    %v686 = vld [vmem:[%s671 + $0x70] sm:$0xff]
    %v687 = vld [vmem:[%s671 + $0x78] sm:$0xff]
    %688 = vmatprep.subr.mxu0 0.0
    %689 = vmatpush1.msra.mxu0 %v672
    %690 = vmatprep.subr.mxu0 0.0
    %691 = vmatpush1.msra.mxu0 %v673
    %692 = vmatprep.subr.mxu0 0.0
    %693 = vmatpush1.msra.mxu0 %v674
    %694 = vmatprep.subr.mxu0 0.0
    %695 = vmatpush1.msra.mxu0 %v675
    %696 = vmatprep.subr.mxu0 0.0
    %697 = vmatpush1.msra.mxu0 %v676
    %698 = vmatprep.subr.mxu0 0.0
    %699 = vmatpush1.msra.mxu0 %v677
    %700 = vmatprep.subr.mxu0 0.0
    %701 = vmatpush1.msra.mxu0 %v678
    %702 = vmatprep.subr.mxu0 0.0
    %703 = vmatpush1.msra.mxu0 %v679
    %704 = vmatprep.subr.mxu0 0.0
    %705 = vmatpush1.msra.mxu0 %v680
    %706 = vmatprep.subr.mxu0 0.0
    %707 = vmatpush1.msra.mxu0 %v681
    %708 = vmatprep.subr.mxu0 0.0
    %709 = vmatpush1.msra.mxu0 %v682
    %710 = vmatprep.subr.mxu0 0.0
    %711 = vmatpush1.msra.mxu0 %v683
    %712 = vmatprep.subr.mxu0 0.0
    %713 = vmatpush1.msra.mxu0 %v684
    %714 = vmatprep.subr.mxu0 0.0
    %715 = vmatpush1.msra.mxu0 %v685
    %716 = vmatprep.subr.mxu0 0.0
    %717 = vmatpush1.msra.mxu0 %v686
    %718 = vmatprep.subr.mxu0 0.0
    %719 = vmatpush1.msra.mxu0 %v687
    %720 = vmatprep.subr.mxu0 0.0
    %721 = vmatpush1.msra.mxu0 0.0
    %722 = vmatprep.subr.mxu0 0.0
    %723 = vmatpush1.msra.mxu0 0.0
    %724 = vmatprep.subr.mxu0 0.0
    %725 = vmatpush1.msra.mxu0 0.0
    %726 = vmatprep.subr.mxu0 0.0
    %727 = vmatpush1.msra.mxu0 0.0
    %728 = vmatprep.subr.mxu0 0.0
    %729 = vmatpush1.msra.mxu0 0.0
    %730 = vmatprep.subr.mxu0 0.0
    %731 = vmatpush1.msra.mxu0 0.0
    %732 = vmatprep.subr.mxu0 0.0
    %733 = vmatpush1.msra.mxu0 0.0
    %734 = vmatprep.subr.mxu0 0.0
    %735 = vmatpush1.msra.mxu0 0.0
    %736 = vmatprep.subr.mxu0 0.0
    %737 = vmatpush1.msra.mxu0 0.0
    %738 = vmatprep.subr.mxu0 0.0
    %739 = vmatpush1.msra.mxu0 0.0
    %740 = vmatprep.subr.mxu0 0.0
    %741 = vmatpush1.msra.mxu0 0.0
    %742 = vmatprep.subr.mxu0 0.0
    %743 = vmatpush1.msra.mxu0 0.0
    %744 = vmatprep.subr.mxu0 0.0
    %745 = vmatpush1.msra.mxu0 0.0
    %746 = vmatprep.subr.mxu0 0.0
    %747 = vmatpush1.msra.mxu0 0.0
    %748 = vmatprep.subr.mxu0 0.0
    %749 = vmatpush1.msra.mxu0 0.0
    %750 = vmatprep.subr.mxu0 0.0
    %751 = vmatpush1.msra.mxu0 0.0
    %752 = vmatprep.mubr.f32.mxu0 0.0
    %753 = vmatmul.mubr.f32.gmra.mrb[0].mxu0 %v670
    %v754 = vpop.f32.mrb[0].mxu0
    %v755 = vadd.f32 0.0, %v754
    %v756 = vpop.f32.mrb[0].mxu0
    %757 = vdwg.mxu0
    %v758 = vmul.f32 %v755, %v755
    %v760 = vrot.slane %v758, 6
    %v762 = vsub.f32 %v755, %v760
    %v763 = vsub.f32 %v665, %v755
    %v764 = vadd.f32 %v762, 1e-05
    %v765 = vrsqrt.pop %v764
    %v767 = vrot.slane %v765, 2
    %v769 = vmul.f32 %v763, %v767
    %v770 = vpack.c.bf16 %v769, %v769
    %s771 = scalar_lea.vmem [#allocation5], 192
    %v772 = vld [vmem:[%s771] sm:$0xf]
    %v773 = vld [vmem:[%s771 + $0x4] sm:$0xf]
    %v774 = vld [vmem:[%s771 + $0x8] sm:$0xf]
    %v775 = vld [vmem:[%s771 + $0xc] sm:$0xf]
    %v776 = vld [vmem:[%s771 + $0x10] sm:$0xf]
    %v777 = vld [vmem:[%s771 + $0x14] sm:$0xf]
    %v778 = vld [vmem:[%s771 + $0x18] sm:$0xf]
    %v779 = vld [vmem:[%s771 + $0x1c] sm:$0xf]
    %v780 = vld [vmem:[%s771 + $0x20] sm:$0xf]
    %v781 = vld [vmem:[%s771 + $0x24] sm:$0xf]
    %v782 = vld [vmem:[%s771 + $0x28] sm:$0xf]
    %v783 = vld [vmem:[%s771 + $0x2c] sm:$0xf]
    %v784 = vld [vmem:[%s771 + $0x30] sm:$0xf]
    %v785 = vld [vmem:[%s771 + $0x34] sm:$0xf]
    %v786 = vld [vmem:[%s771 + $0x38] sm:$0xf]
    %v787 = vld [vmem:[%s771 + $0x3c] sm:$0xf]
    %s788 = scalar_lea.vmem %s4, 3
    %v789 = vld [vmem:[%s788] sm:$0x1]
    %v791 = vlaneseq
    %v792 = vshrl.u32 %v791, 7
    %v793 = vsub.s32 0, %v792
    %v794 = vrot.slane %v789, %v793
    %v812 = vunpack.c.l.b16 %v772
    %v813 = vunpack.c.l.b16 %v773
    %v814 = vunpack.c.l.b16 %v774
    %v815 = vunpack.c.l.b16 %v775
    %v816 = vunpack.c.l.b16 %v776
    %v817 = vunpack.c.l.b16 %v777
    %v818 = vunpack.c.l.b16 %v778
    %v819 = vunpack.c.l.b16 %v779
    %v820 = vunpack.c.l.b16 %v780
    %v821 = vunpack.c.l.b16 %v781
    %v822 = vunpack.c.l.b16 %v782
    %v823 = vunpack.c.l.b16 %v783
    %v824 = vunpack.c.l.b16 %v784
    %v825 = vunpack.c.l.b16 %v785
    %v826 = vunpack.c.l.b16 %v786
    %v827 = vunpack.c.l.b16 %v787
    %v828 = vpack.c.b16 %v813, %v812
    %v829 = vpack.c.b16 %v815, %v814
    %v830 = vpack.c.b16 %v817, %v816
    %v831 = vpack.c.b16 %v819, %v818
    %v832 = vpack.c.b16 %v821, %v820
    %v833 = vpack.c.b16 %v823, %v822
    %v834 = vpack.c.b16 %v825, %v824
    %v835 = vpack.c.b16 %v827, %v826
    %844 = vmatprep.subr.bf16.mxu0 0
    %845 = vmatpush1.bf16.msra.mxu0 %v828
    %846 = vmatprep.subr.bf16.mxu0 0
    %847 = vmatpush1.bf16.msra.mxu0 %v829
    %848 = vmatprep.subr.bf16.mxu0 0
    %849 = vmatpush1.bf16.msra.mxu0 %v830
    %850 = vmatprep.subr.bf16.mxu0 0
    %851 = vmatpush1.bf16.msra.mxu0 %v831
    %852 = vmatprep.subr.bf16.mxu0 0
    %853 = vmatpush1.bf16.msra.mxu0 %v832
    %854 = vmatprep.subr.bf16.mxu0 0
    %855 = vmatpush1.bf16.msra.mxu0 %v833
    %856 = vmatprep.subr.bf16.mxu0 0
    %857 = vmatpush1.bf16.msra.mxu0 %v834
    %858 = vmatprep.subr.bf16.mxu0 0
    %859 = vmatpush1.bf16.msra.mxu0 %v835
    %860 = vmatprep.subr.bf16.mxu0 0
    %861 = vmatpush1.bf16.msra.mxu0 0
    %862 = vmatprep.subr.bf16.mxu0 0
    %863 = vmatpush1.bf16.msra.mxu0 0
    %864 = vmatprep.subr.bf16.mxu0 0
    %865 = vmatpush1.bf16.msra.mxu0 0
    %866 = vmatprep.subr.bf16.mxu0 0
    %867 = vmatpush1.bf16.msra.mxu0 0
    %868 = vmatprep.subr.bf16.mxu0 0
    %869 = vmatpush1.bf16.msra.mxu0 0
    %870 = vmatprep.subr.bf16.mxu0 0
    %871 = vmatpush1.bf16.msra.mxu0 0
    %872 = vmatprep.subr.bf16.mxu0 0
    %873 = vmatpush1.bf16.msra.mxu0 0
    %874 = vmatprep.subr.bf16.mxu0 0
    %875 = vmatpush1.bf16.msra.mxu0 0
    %876 = vmatprep.mubr.bf16.mxu0 0
    %877 = vmatmul.mubr.bf16.gmra.mrb[0].mxu0 %v770
    %v878 = vpop.f32.mrb[0].mxu0
    %v879 = vadd.f32 %v794, %v878
    %v880 = vpop.f32.mrb[0].mxu0
    %v881 = vpop.f32.mrb[0].mxu0
    %v882 = vpop.f32.mrb[0].mxu0
    %883 = vdwg.mxu0
    %v884 = vmul.f32 %v879, 0.5
    %v885 = vmul.f32 %v879, 0.70710677
    %vm886 = vcmp.ge.f32.partialorder %v885, 0.0
    %v887 = vsel %vm886, 1.0, -1.0
    %v888 = vand.u32 2147483647, %v885
    %v889 = vmul.f32 %v888, 0.3275911
    %v890 = vadd.f32 %v889, 1.0
    %v891 = vrcp.pop %v890
    %v892 = vmul.f32 1.0, %v891
    %v893 = vmul.f32 %v892, 1.0614054
    %v894 = vadd.f32 %v893, -1.4531521
    %v895 = vmul.f32 %v894, %v892
    %v896 = vadd.f32 %v895, 1.4214138
    %v897 = vmul.f32 %v896, %v892
    %v898 = vadd.f32 %v897, -0.28449672
    %v899 = vmul.f32 %v898, %v892
    %v900 = vadd.f32 %v899, 0.2548296
    %v901 = vmul.f32 %v900, %v892
    %v902 = vsub.f32 0.0, %v888
    %v903 = vmul.f32 %v902, %v888
    %v904 = vmul.f32 %v903, 1.442695
    %v905 = vpow.pop %v904
    %v906 = vmul.f32 %v901, %v905
    %v907 = vsub.f32 1.0, %v906
    %v908 = vmul.f32 %v887, %v907
    %v909 = vadd.f32 %v908, 1.0
    %v910 = vmul.f32 %v884, %v909
    %v911 = vmul.f32 %v910, %v910
    %v913 = vrot.slane %v911, 6
    %v915 = vsel %vm180, %v910, %v913
    %s916 = scalar_lea.vmem [#allocation7], 384
    %v917 = vld [vmem:[%s916] sm:$0xff]
    %v918 = vld [vmem:[%s916 + $0x8] sm:$0xff]
    %v919 = vld [vmem:[%s916 + $0x10] sm:$0xff]
    %v920 = vld [vmem:[%s916 + $0x18] sm:$0xff]
    %v921 = vld [vmem:[%s916 + $0x20] sm:$0xff]
    %v922 = vld [vmem:[%s916 + $0x28] sm:$0xff]
    %v923 = vld [vmem:[%s916 + $0x30] sm:$0xff]
    %v924 = vld [vmem:[%s916 + $0x38] sm:$0xff]
    %v925 = vld [vmem:[%s916 + $0x40] sm:$0xff]
    %v926 = vld [vmem:[%s916 + $0x48] sm:$0xff]
    %v927 = vld [vmem:[%s916 + $0x50] sm:$0xff]
    %v928 = vld [vmem:[%s916 + $0x58] sm:$0xff]
    %v929 = vld [vmem:[%s916 + $0x60] sm:$0xff]
    %v930 = vld [vmem:[%s916 + $0x68] sm:$0xff]
    %v931 = vld [vmem:[%s916 + $0x70] sm:$0xff]
    %v932 = vld [vmem:[%s916 + $0x78] sm:$0xff]
    %933 = vmatprep.subr.mxu0 0.0
    %934 = vmatpush1.msra.mxu0 %v917
    %935 = vmatprep.subr.mxu0 0.0
    %936 = vmatpush1.msra.mxu0 %v918
    %937 = vmatprep.subr.mxu0 0.0
    %938 = vmatpush1.msra.mxu0 %v919
    %939 = vmatprep.subr.mxu0 0.0
    %940 = vmatpush1.msra.mxu0 %v920
    %941 = vmatprep.subr.mxu0 0.0
    %942 = vmatpush1.msra.mxu0 %v921
    %943 = vmatprep.subr.mxu0 0.0
    %944 = vmatpush1.msra.mxu0 %v922
    %945 = vmatprep.subr.mxu0 0.0
    %946 = vmatpush1.msra.mxu0 %v923
    %947 = vmatprep.subr.mxu0 0.0
    %948 = vmatpush1.msra.mxu0 %v924
    %949 = vmatprep.subr.mxu0 0.0
    %950 = vmatpush1.msra.mxu0 %v925
    %951 = vmatprep.subr.mxu0 0.0
    %952 = vmatpush1.msra.mxu0 %v926
    %953 = vmatprep.subr.mxu0 0.0
    %954 = vmatpush1.msra.mxu0 %v927
    %955 = vmatprep.subr.mxu0 0.0
    %956 = vmatpush1.msra.mxu0 %v928
    %957 = vmatprep.subr.mxu0 0.0
    %958 = vmatpush1.msra.mxu0 %v929
    %959 = vmatprep.subr.mxu0 0.0
    %960 = vmatpush1.msra.mxu0 %v930
    %961 = vmatprep.subr.mxu0 0.0
    %962 = vmatpush1.msra.mxu0 %v931
    %963 = vmatprep.subr.mxu0 0.0
    %964 = vmatpush1.msra.mxu0 %v932
    %965 = vmatprep.subr.mxu0 0.0
    %966 = vmatpush1.msra.mxu0 0.0
    %967 = vmatprep.subr.mxu0 0.0
    %968 = vmatpush1.msra.mxu0 0.0
    %969 = vmatprep.subr.mxu0 0.0
    %970 = vmatpush1.msra.mxu0 0.0
    %971 = vmatprep.subr.mxu0 0.0
    %972 = vmatpush1.msra.mxu0 0.0
    %973 = vmatprep.subr.mxu0 0.0
    %974 = vmatpush1.msra.mxu0 0.0
    %975 = vmatprep.subr.mxu0 0.0
    %976 = vmatpush1.msra.mxu0 0.0
    %977 = vmatprep.subr.mxu0 0.0
    %978 = vmatpush1.msra.mxu0 0.0
    %979 = vmatprep.subr.mxu0 0.0
    %980 = vmatpush1.msra.mxu0 0.0
    %981 = vmatprep.subr.mxu0 0.0
    %982 = vmatpush1.msra.mxu0 0.0
    %983 = vmatprep.subr.mxu0 0.0
    %984 = vmatpush1.msra.mxu0 0.0
    %985 = vmatprep.subr.mxu0 0.0
    %986 = vmatpush1.msra.mxu0 0.0
    %987 = vmatprep.subr.mxu0 0.0
    %988 = vmatpush1.msra.mxu0 0.0
    %989 = vmatprep.subr.mxu0 0.0
    %990 = vmatpush1.msra.mxu0 0.0
    %991 = vmatprep.subr.mxu0 0.0
    %992 = vmatpush1.msra.mxu0 0.0
    %993 = vmatprep.subr.mxu0 0.0
    %994 = vmatpush1.msra.mxu0 0.0
    %995 = vmatprep.subr.mxu0 0.0
    %996 = vmatpush1.msra.mxu0 0.0
    %997 = vmatprep.mubr.f32.mxu0 0.0
    %998 = vmatmul.mubr.f32.gmra.mrb[0].mxu0 %v915
    %v999 = vpop.f32.mrb[0].mxu0
    %v1000 = vadd.f32 0.0, %v999
    %v1001 = vpop.f32.mrb[0].mxu0
    %1002 = vdwg.mxu0
    %v1003 = vmul.f32 %v1000, %v1000
    %v1005 = vrot.slane %v1003, 6
    %v1007 = vsub.f32 %v1000, %v1005
    %v1008 = vsub.f32 %v910, %v1000
    %v1009 = vadd.f32 %v1007, 1e-05
    %v1010 = vrsqrt.pop %v1009
    %v1012 = vrot.slane %v1010, 2
    %v1014 = vmul.f32 %v1008, %v1012
    %v1015 = vpack.c.bf16 %v1014, %v1014
    %s1016 = scalar_lea.vmem [#allocation5], 256
    %v1017 = vld [vmem:[%s1016] sm:$0xf]
    %v1018 = vld [vmem:[%s1016 + $0x4] sm:$0xf]
    %v1019 = vld [vmem:[%s1016 + $0x8] sm:$0xf]
    %v1020 = vld [vmem:[%s1016 + $0xc] sm:$0xf]
    %v1021 = vld [vmem:[%s1016 + $0x10] sm:$0xf]
    %v1022 = vld [vmem:[%s1016 + $0x14] sm:$0xf]
    %v1023 = vld [vmem:[%s1016 + $0x18] sm:$0xf]
    %v1024 = vld [vmem:[%s1016 + $0x1c] sm:$0xf]
    %v1025 = vld [vmem:[%s1016 + $0x20] sm:$0xf]
    %v1026 = vld [vmem:[%s1016 + $0x24] sm:$0xf]
    %v1027 = vld [vmem:[%s1016 + $0x28] sm:$0xf]
    %v1028 = vld [vmem:[%s1016 + $0x2c] sm:$0xf]
    %v1029 = vld [vmem:[%s1016 + $0x30] sm:$0xf]
    %v1030 = vld [vmem:[%s1016 + $0x34] sm:$0xf]
    %v1031 = vld [vmem:[%s1016 + $0x38] sm:$0xf]
    %v1032 = vld [vmem:[%s1016 + $0x3c] sm:$0xf]
    %s1033 = scalar_lea.vmem %s4, 4
    %v1034 = vld [vmem:[%s1033] sm:$0x1]
    %v1036 = vlaneseq
    %v1037 = vshrl.u32 %v1036, 7
    %v1038 = vsub.s32 0, %v1037
    %v1039 = vrot.slane %v1034, %v1038
    %v1057 = vunpack.c.l.b16 %v1017
    %v1058 = vunpack.c.l.b16 %v1018
    %v1059 = vunpack.c.l.b16 %v1019
    %v1060 = vunpack.c.l.b16 %v1020
    %v1061 = vunpack.c.l.b16 %v1021
    %v1062 = vunpack.c.l.b16 %v1022
    %v1063 = vunpack.c.l.b16 %v1023
    %v1064 = vunpack.c.l.b16 %v1024
    %v1065 = vunpack.c.l.b16 %v1025
    %v1066 = vunpack.c.l.b16 %v1026
    %v1067 = vunpack.c.l.b16 %v1027
    %v1068 = vunpack.c.l.b16 %v1028
    %v1069 = vunpack.c.l.b16 %v1029
    %v1070 = vunpack.c.l.b16 %v1030
    %v1071 = vunpack.c.l.b16 %v1031
    %v1072 = vunpack.c.l.b16 %v1032
    %v1073 = vpack.c.b16 %v1058, %v1057
    %v1074 = vpack.c.b16 %v1060, %v1059
    %v1075 = vpack.c.b16 %v1062, %v1061
    %v1076 = vpack.c.b16 %v1064, %v1063
    %v1077 = vpack.c.b16 %v1066, %v1065
    %v1078 = vpack.c.b16 %v1068, %v1067
    %v1079 = vpack.c.b16 %v1070, %v1069
    %v1080 = vpack.c.b16 %v1072, %v1071
    %1089 = vmatprep.subr.bf16.mxu0 0
    %1090 = vmatpush1.bf16.msra.mxu0 %v1073
    %1091 = vmatprep.subr.bf16.mxu0 0
    %1092 = vmatpush1.bf16.msra.mxu0 %v1074
    %1093 = vmatprep.subr.bf16.mxu0 0
    %1094 = vmatpush1.bf16.msra.mxu0 %v1075
    %1095 = vmatprep.subr.bf16.mxu0 0
    %1096 = vmatpush1.bf16.msra.mxu0 %v1076
    %1097 = vmatprep.subr.bf16.mxu0 0
    %1098 = vmatpush1.bf16.msra.mxu0 %v1077
    %1099 = vmatprep.subr.bf16.mxu0 0
    %1100 = vmatpush1.bf16.msra.mxu0 %v1078
    %1101 = vmatprep.subr.bf16.mxu0 0
    %1102 = vmatpush1.bf16.msra.mxu0 %v1079
    %1103 = vmatprep.subr.bf16.mxu0 0
    %1104 = vmatpush1.bf16.msra.mxu0 %v1080
    %1105 = vmatprep.subr.bf16.mxu0 0
    %1106 = vmatpush1.bf16.msra.mxu0 0
    %1107 = vmatprep.subr.bf16.mxu0 0
    %1108 = vmatpush1.bf16.msra.mxu0 0
    %1109 = vmatprep.subr.bf16.mxu0 0
    %1110 = vmatpush1.bf16.msra.mxu0 0
    %1111 = vmatprep.subr.bf16.mxu0 0
    %1112 = vmatpush1.bf16.msra.mxu0 0
    %1113 = vmatprep.subr.bf16.mxu0 0
    %1114 = vmatpush1.bf16.msra.mxu0 0
    %1115 = vmatprep.subr.bf16.mxu0 0
    %1116 = vmatpush1.bf16.msra.mxu0 0
    %1117 = vmatprep.subr.bf16.mxu0 0
    %1118 = vmatpush1.bf16.msra.mxu0 0
    %1119 = vmatprep.subr.bf16.mxu0 0
    %1120 = vmatpush1.bf16.msra.mxu0 0
    %1121 = vmatprep.mubr.bf16.mxu0 0
    %1122 = vmatmul.mubr.bf16.gmra.mrb[0].mxu0 %v1015
    %v1123 = vpop.f32.mrb[0].mxu0
    %v1124 = vadd.f32 %v1039, %v1123
    %v1125 = vpop.f32.mrb[0].mxu0
    %v1126 = vpop.f32.mrb[0].mxu0
    %v1127 = vpop.f32.mrb[0].mxu0
    %1128 = vdwg.mxu0
    %v1129 = vtanh.pop %v1124
    %v1130 = vmul.f32 %v1129, 2.0
    %v1131 = vld [vmem:[%s1] sm:$0x3]
    %v1132 = vmul.f32 %v1130, %v1131
    %1133 = vst [vmem:[#allocation8] sm:$0x3] %v1132
    // Predicated region
    $region34: #{tpu_custom_call.1} parent=1 // pred_check
      _
    $region35: #{tpu_custom_call.1} parent=1 // pred_check_branch
      %1135 = sbr.rel (0) target = $region37
    $region36: #{tpu_custom_call.1} parent=1 // pred_region
      %s1137 = ssub.s32 32, 32
      %1138 = vsyncadd [#allocation4], %s1137
      %s1140 = sshll.u32 [#allocation8], 4
      %s1141 = int_to_ptr.vmem [resolvable:$true] %s1140
      %1143 = dma.vmem_to_hbm [thread:$0]  %s1141, 32, %s5, [#allocation4]
    $region37: #{tpu_custom_call.1} parent=1 // pred_fallthru
      _
    // Predicated region
    $region38: #{tpu_custom_call.1} parent=1 // pred_check
      _
    $region39: #{tpu_custom_call.1} parent=1 // pred_check_branch
      %1145 = sbr.rel (0) target = $region41
    $region40: #{tpu_custom_call.1} parent=1 // pred_region
      %1146 = dma.done [#allocation4], 32
    $region41: #{tpu_custom_call.1} parent=1 // pred_fallthru
      _
    %1147 = vsyncpa [#allocation3], 1
    %1148 = vsyncpa [#allocation6], 1
    %1149 = vsyncpa [#allocation4], 1

</llo_original>
